<compile_context>
chip_gen: v7x
topology: tpu7x:2x2x1
jax: 0.10.0
libtpu: 0.0.40
codegen_flags: <defaults>
</compile_context>

<pallas_src>
import functools

import jax
import jax.numpy as jnp
from jax.experimental import pallas as pl
from jax.experimental.pallas import tpu as pltpu


def _round_up(n, m):
    return ((n + m - 1) // m) * m


# Per-gate column pre-scale (gate order i, f, g, o).  i/f/o columns of
# W_ih / W_hh / bias are scaled by 0.5 so a single tanh(gates) in the kernel
# yields tanh(x/2) for the sigmoid gates (sigmoid(x) = 0.5*tanh(x/2)+0.5) and
# tanh(x) for the cell gate.  Exact reparameterization in f32 (x0.5 is exact).
_GATE_SCALE = (0.5, 0.5, 1.0, 0.5)


def policy_kernel(x_ref, h0_ref, c0_ref,
                  wih_ref, whh_ref, b_ref,
                  w1_ref, b1_ref,
                  w23_ref, b23_ref,
                  out_ref, hn_ref, cn_ref,
                  xproj_ref, hs_ref):
    """Full Policy forward for one (small, padded) batch, resident in VMEM.

    x_ref   : (T*Bp, I)     time-major, batch-padded, pre-flattened input rows
    h0/c0   : (Bp, H)       initial LSTM state
    wih     : (I, 4*Hg)     LSTM input weights, gate g in columns [g*Hg, g*Hg+H)
    whh     : (H, 4*Hg)     LSTM recurrent weights (same packed gate layout)
    b       : (1, 4*Hg)     b_ih + b_hh (same layout; i/f/o columns pre-scaled)
    w1/b1   : (H, H)/(1,H)  linear1
    w23/b23 : (H, Op)/(1,Op) fused [linear2 | linear2_] head, lane-padded
    out     : (T*Bp, Op)    fused mu|sigma output slab (lane-dense)
    hn/cn   : (Bp, H)       final LSTM state
    xproj   : (T*Bp, 4*Hg)  VMEM scratch: hoisted input projection
    hs      : (T*Bp, H)     VMEM scratch: per-step hidden states for the head
    """
    Bp, H = h0_ref.shape
    Hg = b_ref.shape[1] // 4          # per-gate column stride (== H when packed)
    T = x_ref.shape[0] // Bp

    # ---- hoisted input projection: one batched MXU op, off the serial path ----
    xproj_ref[...] = (
        jnp.dot(x_ref[...], wih_ref[...], preferred_element_type=jnp.float32)
        + b_ref[...])

    h = h0_ref[...]
    c = c0_ref[...]

    # ---- recurrence: only h @ W_hh remains on the serial critical path ----
    # T is static and small -> fully unrolled.  whh is read from its ref inside
    # each step (not held as a loop-invariant value across the unrolled loop).
    for t in range(T):
        gates = (xproj_ref[pl.ds(t * Bp, Bp), :]
                 + jnp.dot(h, whh_ref[...], preferred_element_type=jnp.float32))
        tg = jnp.tanh(gates)              # single EUP push covers all 4 gates
        sg = 0.5 * tg + 0.5               # sigmoid(x) = 0.5*tanh(x/2) + 0.5
        i_g = sg[:, 0 * Hg:0 * Hg + H]
        f_g = sg[:, 1 * Hg:1 * Hg + H]
        g_g = tg[:, 2 * Hg:2 * Hg + H]
        o_g = sg[:, 3 * Hg:3 * Hg + H]
        c = f_g * c + i_g * g_g
        h = o_g * jnp.tanh(c)
        hs_ref[pl.ds(t * Bp, Bp), :] = h

    hn_ref[...] = h
    cn_ref[...] = c

    # ---- hoisted MLP head: batched over T*Bp rows, fused mu|sigma projection ----
    z = jnp.maximum(
        jnp.dot(hs_ref[...], w1_ref[...], preferred_element_type=jnp.float32)
        + b1_ref[...], 0.0)
    out_ref[...] = (jnp.dot(z, w23_ref[...], preferred_element_type=jnp.float32)
                    + b23_ref[...])


def prepare_params(params):
    """One-time padding / fusion / gate pre-scaling of the Policy weights.

    Call once per weight update and reuse the result for every forward call, so
    the per-call path is just cheap activation padding + the pallas_call.
    """
    I, H4 = params["wih"].shape
    H = H4 // 4
    O = params["w2"].shape[1]
    # Pack the four gates into one 128-lane block when they fit; otherwise fall
    # back to 128-lane-aligned gate blocks (exactness of the layout is the same).
    Hg = H if 4 * H <= 128 else _round_up(H, 128)
    Op = _round_up(2 * O, 128)          # lane-dense fused mu|sigma output slab

    wih_p = jnp.zeros((I, 4 * Hg), jnp.float32)
    whh_p = jnp.zeros((H, 4 * Hg), jnp.float32)
    b_p = jnp.zeros((1, 4 * Hg), jnp.float32)
    for g, s in enumerate(_GATE_SCALE):
        wih_p = wih_p.at[:, g * Hg:g * Hg + H].set(
            s * params["wih"][:, g * H:(g + 1) * H])
        whh_p = whh_p.at[:, g * Hg:g * Hg + H].set(
            s * params["whh"][:, g * H:(g + 1) * H])
        b_p = b_p.at[:, g * Hg:g * Hg + H].set(
            s * params["b_lstm"][:, g * H:(g + 1) * H])
    w23_p = (jnp.zeros((H, Op), jnp.float32)
             .at[:, :O].set(params["w2"])
             .at[:, O:2 * O].set(params["w3"]))
    b23_p = (jnp.zeros((1, Op), jnp.float32)
             .at[:, :O].set(params["b2"])
             .at[:, O:2 * O].set(params["b3"]))
    return {
        "wih": wih_p, "whh": whh_p, "b": b_p,
        "w1": jnp.asarray(params["w1"], jnp.float32),
        "b1": jnp.asarray(params["b1"], jnp.float32),
        "w23": w23_p, "b23": b23_p,
    }


@functools.partial(jax.jit, static_argnames=("num_outputs",))
def policy_forward(x, hidden, prep, *, num_outputs):
    """x: (B, T, I) float32, hidden: (h0, c0) each (1, B, H), prep from
    prepare_params().  Returns (mu, sigma_sq, (h_n, c_n)) like the PyTorch module."""
    h0, c0 = hidden
    B, T, I = x.shape
    H = prep["w1"].shape[0]
    O = num_outputs
    Op = prep["w23"].shape[1]
    Hg4 = prep["b"].shape[1]
    Bp = _round_up(B, 8)                # sublane-pad the batch

    # time-major, batch-padded, pre-flattened input rows (no in-kernel reshape)
    x_rows = jnp.zeros((T, Bp, I), jnp.float32).at[:, :B, :].set(
        jnp.transpose(x, (1, 0, 2))).reshape(T * Bp, I)
    h0_p = jnp.zeros((Bp, H), jnp.float32).at[:B, :].set(h0.reshape(B, H))
    c0_p = jnp.zeros((Bp, H), jnp.float32).at[:B, :].set(c0.reshape(B, H))

    # Everything is VMEM-resident; at demo sizes this is well under 1 MiB.
    scratch_bytes = (T * Bp) * (Hg4 + H) * 4
    assert scratch_bytes < 8 * 1024 * 1024, \
        "add a T-chunk grid (and vmem_limit_bytes) before scaling T*B up"

    vmem = pl.BlockSpec(memory_space=pltpu.MemorySpace.VMEM)
    inputs = (x_rows, h0_p, c0_p, prep["wih"], prep["whh"], prep["b"],
              prep["w1"], prep["b1"], prep["w23"], prep["b23"])

    out_flat, hn_p, cn_p = pl.pallas_call(
        policy_kernel,
        out_shape=(
            jax.ShapeDtypeStruct((T * Bp, Op), jnp.float32),
            jax.ShapeDtypeStruct((Bp, H), jnp.float32),
            jax.ShapeDtypeStruct((Bp, H), jnp.float32),
        ),
        in_specs=[vmem] * len(inputs),
        out_specs=(vmem, vmem, vmem),
        scratch_shapes=[
            pltpu.VMEM((T * Bp, Hg4), jnp.float32),   # hoisted input projection
            pltpu.VMEM((T * Bp, H), jnp.float32),     # per-step hidden states
        ],
    )(*inputs)

    out = out_flat.reshape(T, Bp, Op)
    mu = jnp.transpose(out[:, :B, :O], (1, 0, 2))            # (B, T, O)
    sigma_sq = jnp.transpose(out[:, :B, O:2 * O], (1, 0, 2))
    h_n = hn_p[:B, :].reshape(1, B, H)
    c_n = cn_p[:B, :].reshape(1, B, H)
    return mu, sigma_sq, (h_n, c_n)


def _reference_forward(x, hidden, params):
    """Pure-JAX reference (same semantics, raw unpadded params) for a silent check."""
    h = hidden[0][0]
    c = hidden[1][0]
    H = h.shape[-1]
    mus, sigs = [], []
    for t in range(x.shape[1]):
        g = x[:, t, :] @ params["wih"] + h @ params["whh"] + params["b_lstm"]
        i = jax.nn.sigmoid(g[:, 0*H:1*H])
        f = jax.nn.sigmoid(g[:, 1*H:2*H])
        gg = jnp.tanh(g[:, 2*H:3*H])
        o = jax.nn.sigmoid(g[:, 3*H:4*H])
        c = f * c + i * gg
        h = o * jnp.tanh(c)
        z = jax.nn.relu(h @ params["w1"] + params["b1"])
        mus.append(z @ params["w2"] + params["b2"])
        sigs.append(z @ params["w3"] + params["b3"])
    return (jnp.stack(mus, axis=1), jnp.stack(sigs, axis=1),
            (h[None], c[None]))


def make_params(key, num_inputs, hidden_size, num_outputs):
    ks = jax.random.split(key, 10)
    s = 0.1
    # LSTM weights stored pre-transposed: (in_dim, 4H), gate order i, f, g, o.
    wih = s * jax.random.normal(ks[0], (num_inputs, 4 * hidden_size), jnp.float32)
    whh = s * jax.random.normal(ks[1], (hidden_size, 4 * hidden_size), jnp.float32)
    b_ih = s * jax.random.normal(ks[2], (4 * hidden_size,), jnp.float32)
    b_hh = s * jax.random.normal(ks[3], (4 * hidden_size,), jnp.float32)
    return {
        "wih": wih,
        "whh": whh,
        "b_lstm": (b_ih + b_hh).reshape(1, -1),
        "w1": s * jax.random.normal(ks[4], (hidden_size, hidden_size), jnp.float32),
        "b1": s * jax.random.normal(ks[5], (1, hidden_size), jnp.float32),
        "w2": s * jax.random.normal(ks[6], (hidden_size, num_outputs), jnp.float32),
        "b2": s * jax.random.normal(ks[7], (1, num_outputs), jnp.float32),
        "w3": s * jax.random.normal(ks[8], (hidden_size, num_outputs), jnp.float32),
        "b3": s * jax.random.normal(ks[9], (1, num_outputs), jnp.float32),
    }


if __name__ == "__main__":
    B, T, I, H, O = 2, 8, 4, 32, 4   # batch, seq, num_inputs, hidden, action dims

    key = jax.random.PRNGKey(0)
    k_x, k_h, k_c, k_p = jax.random.split(key, 4)
    x = jax.random.normal(k_x, (B, T, I), jnp.float32)
    h0 = jax.random.normal(k_h, (1, B, H), jnp.float32)
    c0 = jax.random.normal(k_c, (1, B, H), jnp.float32)
    params = make_params(k_p, I, H, O)

    # one-time weight preparation (cached); per-call path is just policy_forward
    prep = prepare_params(params)

    mu, sigma_sq, (h_n, c_n) = policy_forward(x, (h0, c0), prep, num_outputs=O)
    jax.block_until_ready((mu, sigma_sq, h_n, c_n))

    # silent correctness check against a pure-JAX reference (raw params)
    mu_r, sig_r, (h_r, c_r) = _reference_forward(x, (h0, c0), params)
    assert jnp.allclose(mu, mu_r, atol=1e-4, rtol=1e-4)
    assert jnp.allclose(sigma_sq, sig_r, atol=1e-4, rtol=1e-4)
    assert jnp.allclose(h_n, h_r, atol=1e-4, rtol=1e-4)
    assert jnp.allclose(c_n, c_r, atol=1e-4, rtol=1e-4)

    print("KERNEL_OK")
</pallas_src>

<mosaic_0001>
module attributes {stable_mosaic.version = 11 : i64} {
  func.func @policy_kernel(%arg0: memref<64x4xf32, #tpu.memory_space<vmem>>, %arg1: memref<8x32xf32, #tpu.memory_space<vmem>>, %arg2: memref<8x32xf32, #tpu.memory_space<vmem>>, %arg3: memref<4x128xf32, #tpu.memory_space<vmem>>, %arg4: memref<32x128xf32, #tpu.memory_space<vmem>>, %arg5: memref<1x128xf32, #tpu.memory_space<vmem>>, %arg6: memref<32x32xf32, #tpu.memory_space<vmem>>, %arg7: memref<1x32xf32, #tpu.memory_space<vmem>>, %arg8: memref<32x128xf32, #tpu.memory_space<vmem>>, %arg9: memref<1x128xf32, #tpu.memory_space<vmem>>, %arg10: memref<64x128xf32, #tpu.memory_space<vmem>>, %arg11: memref<8x32xf32, #tpu.memory_space<vmem>>, %arg12: memref<8x32xf32, #tpu.memory_space<vmem>>, %arg13: memref<64x128xf32, #tpu.memory_space<vmem>>, %arg14: memref<64x32xf32, #tpu.memory_space<vmem>>) attributes {dimension_semantics = [], scalar_prefetch = 0 : i64, scratch_operands = 2 : i64, tpu.core_type = #tpu.core_type<tc>} {
    %c0 = arith.constant 0 : index
    %c0_0 = arith.constant 0 : index
    %0 = vector.load %arg0[%c0, %c0_0] : memref<64x4xf32, #tpu.memory_space<vmem>>, vector<64x4xf32>
    %c0_1 = arith.constant 0 : index
    %c0_2 = arith.constant 0 : index
    %1 = vector.load %arg3[%c0_1, %c0_2] : memref<4x128xf32, #tpu.memory_space<vmem>>, vector<4x128xf32>
    %cst = arith.constant dense<0.000000e+00> : vector<64x128xf32>
    %2 = tpu.matmul %0, %1, %cst {dimension_numbers = #tpu.dot_dimension_numbers<[1], [0], [0], [1], [0, 0, 1, 1], [], []>} : vector<64x4xf32>, vector<4x128xf32>, vector<64x128xf32> -> vector<64x128xf32>
    %c0_3 = arith.constant 0 : index
    %c0_4 = arith.constant 0 : index
    %3 = vector.load %arg5[%c0_3, %c0_4] : memref<1x128xf32, #tpu.memory_space<vmem>>, vector<1x128xf32>
    %4 = vector.broadcast %3 : vector<1x128xf32> to vector<64x128xf32>
    %5 = arith.addf %2, %4 : vector<64x128xf32>
    %c0_5 = arith.constant 0 : index
    %c0_6 = arith.constant 0 : index
    %6 = vector.load %arg13[%c0_5, %c0_6] : memref<64x128xf32, #tpu.memory_space<vmem>>, vector<64x128xf32>
    tpu.vector_store %arg13[%c0_5, %c0_6], %5 {strides = array<i32>} : memref<64x128xf32, #tpu.memory_space<vmem>>, vector<64x128xf32>,
    %c0_7 = arith.constant 0 : index
    %c0_8 = arith.constant 0 : index
    %7 = vector.load %arg1[%c0_7, %c0_8] : memref<8x32xf32, #tpu.memory_space<vmem>>, vector<8x32xf32>
    %c0_9 = arith.constant 0 : index
    %c0_10 = arith.constant 0 : index
    %8 = vector.load %arg2[%c0_9, %c0_10] : memref<8x32xf32, #tpu.memory_space<vmem>>, vector<8x32xf32>
    %c0_11 = arith.constant 0 : index
    %c0_12 = arith.constant 0 : index
    %9 = vector.load %arg13[%c0_11, %c0_12] : memref<64x128xf32, #tpu.memory_space<vmem>>, vector<8x128xf32>
    %c0_13 = arith.constant 0 : index
    %c0_14 = arith.constant 0 : index
    %10 = vector.load %arg4[%c0_13, %c0_14] : memref<32x128xf32, #tpu.memory_space<vmem>>, vector<32x128xf32>
    %cst_15 = arith.constant dense<0.000000e+00> : vector<8x128xf32>
    %11 = tpu.matmul %7, %10, %cst_15 {dimension_numbers = #tpu.dot_dimension_numbers<[1], [0], [0], [1], [0, 0, 1, 1], [], []>} : vector<8x32xf32>, vector<32x128xf32>, vector<8x128xf32> -> vector<8x128xf32>
    %12 = arith.addf %9, %11 : vector<8x128xf32>
    %13 = math.tanh %12 : vector<8x128xf32>
    %cst_16 = arith.constant 5.000000e-01 : f32
    %14 = vector.broadcast %cst_16 : f32 to vector<8x128xf32>
    %15 = arith.mulf %14, %13 : vector<8x128xf32>
    %cst_17 = arith.constant 5.000000e-01 : f32
    %16 = vector.broadcast %cst_17 : f32 to vector<8x128xf32>
    %17 = arith.addf %15, %16 : vector<8x128xf32>
    %18 = vector.extract_strided_slice %17 {offsets = [0, 0], sizes = [8, 32], strides = [1, 1]} : vector<8x128xf32> to vector<8x32xf32>
    %19 = vector.extract_strided_slice %17 {offsets = [0, 32], sizes = [8, 32], strides = [1, 1]} : vector<8x128xf32> to vector<8x32xf32>
    %20 = vector.extract_strided_slice %13 {offsets = [0, 64], sizes = [8, 32], strides = [1, 1]} : vector<8x128xf32> to vector<8x32xf32>
    %21 = vector.extract_strided_slice %17 {offsets = [0, 96], sizes = [8, 32], strides = [1, 1]} : vector<8x128xf32> to vector<8x32xf32>
    %22 = arith.mulf %19, %8 : vector<8x32xf32>
    %23 = arith.mulf %18, %20 : vector<8x32xf32>
    %24 = arith.addf %22, %23 : vector<8x32xf32>
    %25 = math.tanh %24 : vector<8x32xf32>
    %26 = arith.mulf %21, %25 : vector<8x32xf32>
    %c0_18 = arith.constant 0 : index
    %c0_19 = arith.constant 0 : index
    %27 = vector.load %arg14[%c0_18, %c0_19] : memref<64x32xf32, #tpu.memory_space<vmem>>, vector<8x32xf32>
    tpu.vector_store %arg14[%c0_18, %c0_19], %26 {strides = array<i32>} : memref<64x32xf32, #tpu.memory_space<vmem>>, vector<8x32xf32>,
    %c8 = arith.constant 8 : index
    %c0_20 = arith.constant 0 : index
    %28 = vector.load %arg13[%c8, %c0_20] : memref<64x128xf32, #tpu.memory_space<vmem>>, vector<8x128xf32>
    %c0_21 = arith.constant 0 : index
    %c0_22 = arith.constant 0 : index
    %29 = vector.load %arg4[%c0_21, %c0_22] : memref<32x128xf32, #tpu.memory_space<vmem>>, vector<32x128xf32>
    %cst_23 = arith.constant dense<0.000000e+00> : vector<8x128xf32>
    %30 = tpu.matmul %26, %29, %cst_23 {dimension_numbers = #tpu.dot_dimension_numbers<[1], [0], [0], [1], [0, 0, 1, 1], [], []>} : vector<8x32xf32>, vector<32x128xf32>, vector<8x128xf32> -> vector<8x128xf32>
    %31 = arith.addf %28, %30 : vector<8x128xf32>
    %32 = math.tanh %31 : vector<8x128xf32>
    %cst_24 = arith.constant 5.000000e-01 : f32
    %33 = vector.broadcast %cst_24 : f32 to vector<8x128xf32>
    %34 = arith.mulf %33, %32 : vector<8x128xf32>
    %cst_25 = arith.constant 5.000000e-01 : f32
    %35 = vector.broadcast %cst_25 : f32 to vector<8x128xf32>
    %36 = arith.addf %34, %35 : vector<8x128xf32>
    %37 = vector.extract_strided_slice %36 {offsets = [0, 0], sizes = [8, 32], strides = [1, 1]} : vector<8x128xf32> to vector<8x32xf32>
    %38 = vector.extract_strided_slice %36 {offsets = [0, 32], sizes = [8, 32], strides = [1, 1]} : vector<8x128xf32> to vector<8x32xf32>
    %39 = vector.extract_strided_slice %32 {offsets = [0, 64], sizes = [8, 32], strides = [1, 1]} : vector<8x128xf32> to vector<8x32xf32>
    %40 = vector.extract_strided_slice %36 {offsets = [0, 96], sizes = [8, 32], strides = [1, 1]} : vector<8x128xf32> to vector<8x32xf32>
    %41 = arith.mulf %38, %24 : vector<8x32xf32>
    %42 = arith.mulf %37, %39 : vector<8x32xf32>
    %43 = arith.addf %41, %42 : vector<8x32xf32>
    %44 = math.tanh %43 : vector<8x32xf32>
    %45 = arith.mulf %40, %44 : vector<8x32xf32>
    %c8_26 = arith.constant 8 : index
    %c0_27 = arith.constant 0 : index
    %46 = vector.load %arg14[%c8_26, %c0_27] : memref<64x32xf32, #tpu.memory_space<vmem>>, vector<8x32xf32>
    tpu.vector_store %arg14[%c8_26, %c0_27], %45 {strides = array<i32>} : memref<64x32xf32, #tpu.memory_space<vmem>>, vector<8x32xf32>,
    %c16 = arith.constant 16 : index
    %c0_28 = arith.constant 0 : index
    %47 = vector.load %arg13[%c16, %c0_28] : memref<64x128xf32, #tpu.memory_space<vmem>>, vector<8x128xf32>
    %c0_29 = arith.constant 0 : index
    %c0_30 = arith.constant 0 : index
    %48 = vector.load %arg4[%c0_29, %c0_30] : memref<32x128xf32, #tpu.memory_space<vmem>>, vector<32x128xf32>
    %cst_31 = arith.constant dense<0.000000e+00> : vector<8x128xf32>
    %49 = tpu.matmul %45, %48, %cst_31 {dimension_numbers = #tpu.dot_dimension_numbers<[1], [0], [0], [1], [0, 0, 1, 1], [], []>} : vector<8x32xf32>, vector<32x128xf32>, vector<8x128xf32> -> vector<8x128xf32>
    %50 = arith.addf %47, %49 : vector<8x128xf32>
    %51 = math.tanh %50 : vector<8x128xf32>
    %cst_32 = arith.constant 5.000000e-01 : f32
    %52 = vector.broadcast %cst_32 : f32 to vector<8x128xf32>
    %53 = arith.mulf %52, %51 : vector<8x128xf32>
    %cst_33 = arith.constant 5.000000e-01 : f32
    %54 = vector.broadcast %cst_33 : f32 to vector<8x128xf32>
    %55 = arith.addf %53, %54 : vector<8x128xf32>
    %56 = vector.extract_strided_slice %55 {offsets = [0, 0], sizes = [8, 32], strides = [1, 1]} : vector<8x128xf32> to vector<8x32xf32>
    %57 = vector.extract_strided_slice %55 {offsets = [0, 32], sizes = [8, 32], strides = [1, 1]} : vector<8x128xf32> to vector<8x32xf32>
    %58 = vector.extract_strided_slice %51 {offsets = [0, 64], sizes = [8, 32], strides = [1, 1]} : vector<8x128xf32> to vector<8x32xf32>
    %59 = vector.extract_strided_slice %55 {offsets = [0, 96], sizes = [8, 32], strides = [1, 1]} : vector<8x128xf32> to vector<8x32xf32>
    %60 = arith.mulf %57, %43 : vector<8x32xf32>
    %61 = arith.mulf %56, %58 : vector<8x32xf32>
    %62 = arith.addf %60, %61 : vector<8x32xf32>
    %63 = math.tanh %62 : vector<8x32xf32>
    %64 = arith.mulf %59, %63 : vector<8x32xf32>
    %c16_34 = arith.constant 16 : index
    %c0_35 = arith.constant 0 : index
    %65 = vector.load %arg14[%c16_34, %c0_35] : memref<64x32xf32, #tpu.memory_space<vmem>>, vector<8x32xf32>
    tpu.vector_store %arg14[%c16_34, %c0_35], %64 {strides = array<i32>} : memref<64x32xf32, #tpu.memory_space<vmem>>, vector<8x32xf32>,
    %c24 = arith.constant 24 : index
    %c0_36 = arith.constant 0 : index
    %66 = vector.load %arg13[%c24, %c0_36] : memref<64x128xf32, #tpu.memory_space<vmem>>, vector<8x128xf32>
    %c0_37 = arith.constant 0 : index
    %c0_38 = arith.constant 0 : index
    %67 = vector.load %arg4[%c0_37, %c0_38] : memref<32x128xf32, #tpu.memory_space<vmem>>, vector<32x128xf32>
    %cst_39 = arith.constant dense<0.000000e+00> : vector<8x128xf32>
    %68 = tpu.matmul %64, %67, %cst_39 {dimension_numbers = #tpu.dot_dimension_numbers<[1], [0], [0], [1], [0, 0, 1, 1], [], []>} : vector<8x32xf32>, vector<32x128xf32>, vector<8x128xf32> -> vector<8x128xf32>
    %69 = arith.addf %66, %68 : vector<8x128xf32>
    %70 = math.tanh %69 : vector<8x128xf32>
    %cst_40 = arith.constant 5.000000e-01 : f32
    %71 = vector.broadcast %cst_40 : f32 to vector<8x128xf32>
    %72 = arith.mulf %71, %70 : vector<8x128xf32>
    %cst_41 = arith.constant 5.000000e-01 : f32
    %73 = vector.broadcast %cst_41 : f32 to vector<8x128xf32>
    %74 = arith.addf %72, %73 : vector<8x128xf32>
    %75 = vector.extract_strided_slice %74 {offsets = [0, 0], sizes = [8, 32], strides = [1, 1]} : vector<8x128xf32> to vector<8x32xf32>
    %76 = vector.extract_strided_slice %74 {offsets = [0, 32], sizes = [8, 32], strides = [1, 1]} : vector<8x128xf32> to vector<8x32xf32>
    %77 = vector.extract_strided_slice %70 {offsets = [0, 64], sizes = [8, 32], strides = [1, 1]} : vector<8x128xf32> to vector<8x32xf32>
    %78 = vector.extract_strided_slice %74 {offsets = [0, 96], sizes = [8, 32], strides = [1, 1]} : vector<8x128xf32> to vector<8x32xf32>
    %79 = arith.mulf %76, %62 : vector<8x32xf32>
    %80 = arith.mulf %75, %77 : vector<8x32xf32>
    %81 = arith.addf %79, %80 : vector<8x32xf32>
    %82 = math.tanh %81 : vector<8x32xf32>
    %83 = arith.mulf %78, %82 : vector<8x32xf32>
    %c24_42 = arith.constant 24 : index
    %c0_43 = arith.constant 0 : index
    %84 = vector.load %arg14[%c24_42, %c0_43] : memref<64x32xf32, #tpu.memory_space<vmem>>, vector<8x32xf32>
    tpu.vector_store %arg14[%c24_42, %c0_43], %83 {strides = array<i32>} : memref<64x32xf32, #tpu.memory_space<vmem>>, vector<8x32xf32>,
    %c32 = arith.constant 32 : index
    %c0_44 = arith.constant 0 : index
    %85 = vector.load %arg13[%c32, %c0_44] : memref<64x128xf32, #tpu.memory_space<vmem>>, vector<8x128xf32>
    %c0_45 = arith.constant 0 : index
    %c0_46 = arith.constant 0 : index
    %86 = vector.load %arg4[%c0_45, %c0_46] : memref<32x128xf32, #tpu.memory_space<vmem>>, vector<32x128xf32>
    %cst_47 = arith.constant dense<0.000000e+00> : vector<8x128xf32>
    %87 = tpu.matmul %83, %86, %cst_47 {dimension_numbers = #tpu.dot_dimension_numbers<[1], [0], [0], [1], [0, 0, 1, 1], [], []>} : vector<8x32xf32>, vector<32x128xf32>, vector<8x128xf32> -> vector<8x128xf32>
    %88 = arith.addf %85, %87 : vector<8x128xf32>
    %89 = math.tanh %88 : vector<8x128xf32>
    %cst_48 = arith.constant 5.000000e-01 : f32
    %90 = vector.broadcast %cst_48 : f32 to vector<8x128xf32>
    %91 = arith.mulf %90, %89 : vector<8x128xf32>
    %cst_49 = arith.constant 5.000000e-01 : f32
    %92 = vector.broadcast %cst_49 : f32 to vector<8x128xf32>
    %93 = arith.addf %91, %92 : vector<8x128xf32>
    %94 = vector.extract_strided_slice %93 {offsets = [0, 0], sizes = [8, 32], strides = [1, 1]} : vector<8x128xf32> to vector<8x32xf32>
    %95 = vector.extract_strided_slice %93 {offsets = [0, 32], sizes = [8, 32], strides = [1, 1]} : vector<8x128xf32> to vector<8x32xf32>
    %96 = vector.extract_strided_slice %89 {offsets = [0, 64], sizes = [8, 32], strides = [1, 1]} : vector<8x128xf32> to vector<8x32xf32>
    %97 = vector.extract_strided_slice %93 {offsets = [0, 96], sizes = [8, 32], strides = [1, 1]} : vector<8x128xf32> to vector<8x32xf32>
    %98 = arith.mulf %95, %81 : vector<8x32xf32>
    %99 = arith.mulf %94, %96 : vector<8x32xf32>
    %100 = arith.addf %98, %99 : vector<8x32xf32>
    %101 = math.tanh %100 : vector<8x32xf32>
    %102 = arith.mulf %97, %101 : vector<8x32xf32>
    %c32_50 = arith.constant 32 : index
    %c0_51 = arith.constant 0 : index
    %103 = vector.load %arg14[%c32_50, %c0_51] : memref<64x32xf32, #tpu.memory_space<vmem>>, vector<8x32xf32>
    tpu.vector_store %arg14[%c32_50, %c0_51], %102 {strides = array<i32>} : memref<64x32xf32, #tpu.memory_space<vmem>>, vector<8x32xf32>,
    %c40 = arith.constant 40 : index
    %c0_52 = arith.constant 0 : index
    %104 = vector.load %arg13[%c40, %c0_52] : memref<64x128xf32, #tpu.memory_space<vmem>>, vector<8x128xf32>
    %c0_53 = arith.constant 0 : index
    %c0_54 = arith.constant 0 : index
    %105 = vector.load %arg4[%c0_53, %c0_54] : memref<32x128xf32, #tpu.memory_space<vmem>>, vector<32x128xf32>
    %cst_55 = arith.constant dense<0.000000e+00> : vector<8x128xf32>
    %106 = tpu.matmul %102, %105, %cst_55 {dimension_numbers = #tpu.dot_dimension_numbers<[1], [0], [0], [1], [0, 0, 1, 1], [], []>} : vector<8x32xf32>, vector<32x128xf32>, vector<8x128xf32> -> vector<8x128xf32>
    %107 = arith.addf %104, %106 : vector<8x128xf32>
    %108 = math.tanh %107 : vector<8x128xf32>
    %cst_56 = arith.constant 5.000000e-01 : f32
    %109 = vector.broadcast %cst_56 : f32 to vector<8x128xf32>
    %110 = arith.mulf %109, %108 : vector<8x128xf32>
    %cst_57 = arith.constant 5.000000e-01 : f32
    %111 = vector.broadcast %cst_57 : f32 to vector<8x128xf32>
    %112 = arith.addf %110, %111 : vector<8x128xf32>
    %113 = vector.extract_strided_slice %112 {offsets = [0, 0], sizes = [8, 32], strides = [1, 1]} : vector<8x128xf32> to vector<8x32xf32>
    %114 = vector.extract_strided_slice %112 {offsets = [0, 32], sizes = [8, 32], strides = [1, 1]} : vector<8x128xf32> to vector<8x32xf32>
    %115 = vector.extract_strided_slice %108 {offsets = [0, 64], sizes = [8, 32], strides = [1, 1]} : vector<8x128xf32> to vector<8x32xf32>
    %116 = vector.extract_strided_slice %112 {offsets = [0, 96], sizes = [8, 32], strides = [1, 1]} : vector<8x128xf32> to vector<8x32xf32>
    %117 = arith.mulf %114, %100 : vector<8x32xf32>
    %118 = arith.mulf %113, %115 : vector<8x32xf32>
    %119 = arith.addf %117, %118 : vector<8x32xf32>
    %120 = math.tanh %119 : vector<8x32xf32>
    %121 = arith.mulf %116, %120 : vector<8x32xf32>
    %c40_58 = arith.constant 40 : index
    %c0_59 = arith.constant 0 : index
    %122 = vector.load %arg14[%c40_58, %c0_59] : memref<64x32xf32, #tpu.memory_space<vmem>>, vector<8x32xf32>
    tpu.vector_store %arg14[%c40_58, %c0_59], %121 {strides = array<i32>} : memref<64x32xf32, #tpu.memory_space<vmem>>, vector<8x32xf32>,
    %c48 = arith.constant 48 : index
    %c0_60 = arith.constant 0 : index
    %123 = vector.load %arg13[%c48, %c0_60] : memref<64x128xf32, #tpu.memory_space<vmem>>, vector<8x128xf32>
    %c0_61 = arith.constant 0 : index
    %c0_62 = arith.constant 0 : index
    %124 = vector.load %arg4[%c0_61, %c0_62] : memref<32x128xf32, #tpu.memory_space<vmem>>, vector<32x128xf32>
    %cst_63 = arith.constant dense<0.000000e+00> : vector<8x128xf32>
    %125 = tpu.matmul %121, %124, %cst_63 {dimension_numbers = #tpu.dot_dimension_numbers<[1], [0], [0], [1], [0, 0, 1, 1], [], []>} : vector<8x32xf32>, vector<32x128xf32>, vector<8x128xf32> -> vector<8x128xf32>
    %126 = arith.addf %123, %125 : vector<8x128xf32>
    %127 = math.tanh %126 : vector<8x128xf32>
    %cst_64 = arith.constant 5.000000e-01 : f32
    %128 = vector.broadcast %cst_64 : f32 to vector<8x128xf32>
    %129 = arith.mulf %128, %127 : vector<8x128xf32>
    %cst_65 = arith.constant 5.000000e-01 : f32
    %130 = vector.broadcast %cst_65 : f32 to vector<8x128xf32>
    %131 = arith.addf %129, %130 : vector<8x128xf32>
    %132 = vector.extract_strided_slice %131 {offsets = [0, 0], sizes = [8, 32], strides = [1, 1]} : vector<8x128xf32> to vector<8x32xf32>
    %133 = vector.extract_strided_slice %131 {offsets = [0, 32], sizes = [8, 32], strides = [1, 1]} : vector<8x128xf32> to vector<8x32xf32>
    %134 = vector.extract_strided_slice %127 {offsets = [0, 64], sizes = [8, 32], strides = [1, 1]} : vector<8x128xf32> to vector<8x32xf32>
    %135 = vector.extract_strided_slice %131 {offsets = [0, 96], sizes = [8, 32], strides = [1, 1]} : vector<8x128xf32> to vector<8x32xf32>
    %136 = arith.mulf %133, %119 : vector<8x32xf32>
    %137 = arith.mulf %132, %134 : vector<8x32xf32>
    %138 = arith.addf %136, %137 : vector<8x32xf32>
    %139 = math.tanh %138 : vector<8x32xf32>
    %140 = arith.mulf %135, %139 : vector<8x32xf32>
    %c48_66 = arith.constant 48 : index
    %c0_67 = arith.constant 0 : index
    %141 = vector.load %arg14[%c48_66, %c0_67] : memref<64x32xf32, #tpu.memory_space<vmem>>, vector<8x32xf32>
    tpu.vector_store %arg14[%c48_66, %c0_67], %140 {strides = array<i32>} : memref<64x32xf32, #tpu.memory_space<vmem>>, vector<8x32xf32>,
    %c56 = arith.constant 56 : index
    %c0_68 = arith.constant 0 : index
    %142 = vector.load %arg13[%c56, %c0_68] : memref<64x128xf32, #tpu.memory_space<vmem>>, vector<8x128xf32>
    %c0_69 = arith.constant 0 : index
    %c0_70 = arith.constant 0 : index
    %143 = vector.load %arg4[%c0_69, %c0_70] : memref<32x128xf32, #tpu.memory_space<vmem>>, vector<32x128xf32>
    %cst_71 = arith.constant dense<0.000000e+00> : vector<8x128xf32>
    %144 = tpu.matmul %140, %143, %cst_71 {dimension_numbers = #tpu.dot_dimension_numbers<[1], [0], [0], [1], [0, 0, 1, 1], [], []>} : vector<8x32xf32>, vector<32x128xf32>, vector<8x128xf32> -> vector<8x128xf32>
    %145 = arith.addf %142, %144 : vector<8x128xf32>
    %146 = math.tanh %145 : vector<8x128xf32>
    %cst_72 = arith.constant 5.000000e-01 : f32
    %147 = vector.broadcast %cst_72 : f32 to vector<8x128xf32>
    %148 = arith.mulf %147, %146 : vector<8x128xf32>
    %cst_73 = arith.constant 5.000000e-01 : f32
    %149 = vector.broadcast %cst_73 : f32 to vector<8x128xf32>
    %150 = arith.addf %148, %149 : vector<8x128xf32>
    %151 = vector.extract_strided_slice %150 {offsets = [0, 0], sizes = [8, 32], strides = [1, 1]} : vector<8x128xf32> to vector<8x32xf32>
    %152 = vector.extract_strided_slice %150 {offsets = [0, 32], sizes = [8, 32], strides = [1, 1]} : vector<8x128xf32> to vector<8x32xf32>
    %153 = vector.extract_strided_slice %146 {offsets = [0, 64], sizes = [8, 32], strides = [1, 1]} : vector<8x128xf32> to vector<8x32xf32>
    %154 = vector.extract_strided_slice %150 {offsets = [0, 96], sizes = [8, 32], strides = [1, 1]} : vector<8x128xf32> to vector<8x32xf32>
    %155 = arith.mulf %152, %138 : vector<8x32xf32>
    %156 = arith.mulf %151, %153 : vector<8x32xf32>
    %157 = arith.addf %155, %156 : vector<8x32xf32>
    %158 = math.tanh %157 : vector<8x32xf32>
    %159 = arith.mulf %154, %158 : vector<8x32xf32>
    %c56_74 = arith.constant 56 : index
    %c0_75 = arith.constant 0 : index
    %160 = vector.load %arg14[%c56_74, %c0_75] : memref<64x32xf32, #tpu.memory_space<vmem>>, vector<8x32xf32>
    tpu.vector_store %arg14[%c56_74, %c0_75], %159 {strides = array<i32>} : memref<64x32xf32, #tpu.memory_space<vmem>>, vector<8x32xf32>,
    %c0_76 = arith.constant 0 : index
    %c0_77 = arith.constant 0 : index
    %161 = vector.load %arg11[%c0_76, %c0_77] : memref<8x32xf32, #tpu.memory_space<vmem>>, vector<8x32xf32>
    tpu.vector_store %arg11[%c0_76, %c0_77], %159 {strides = array<i32>} : memref<8x32xf32, #tpu.memory_space<vmem>>, vector<8x32xf32>,
    %c0_78 = arith.constant 0 : index
    %c0_79 = arith.constant 0 : index
    %162 = vector.load %arg12[%c0_78, %c0_79] : memref<8x32xf32, #tpu.memory_space<vmem>>, vector<8x32xf32>
    tpu.vector_store %arg12[%c0_78, %c0_79], %157 {strides = array<i32>} : memref<8x32xf32, #tpu.memory_space<vmem>>, vector<8x32xf32>,
    %c0_80 = arith.constant 0 : index
    %c0_81 = arith.constant 0 : index
    %163 = vector.load %arg14[%c0_80, %c0_81] : memref<64x32xf32, #tpu.memory_space<vmem>>, vector<64x32xf32>
    %c0_82 = arith.constant 0 : index
    %c0_83 = arith.constant 0 : index
    %164 = vector.load %arg6[%c0_82, %c0_83] : memref<32x32xf32, #tpu.memory_space<vmem>>, vector<32x32xf32>
    %cst_84 = arith.constant dense<0.000000e+00> : vector<64x32xf32>
    %165 = tpu.matmul %163, %164, %cst_84 {dimension_numbers = #tpu.dot_dimension_numbers<[1], [0], [0], [1], [0, 0, 1, 1], [], []>} : vector<64x32xf32>, vector<32x32xf32>, vector<64x32xf32> -> vector<64x32xf32>
    %c0_85 = arith.constant 0 : index
    %c0_86 = arith.constant 0 : index
    %166 = vector.load %arg7[%c0_85, %c0_86] : memref<1x32xf32, #tpu.memory_space<vmem>>, vector<1x32xf32>
    %167 = vector.broadcast %166 : vector<1x32xf32> to vector<64x32xf32>
    %168 = arith.addf %165, %167 : vector<64x32xf32>
    %cst_87 = arith.constant 0.000000e+00 : f32
    %169 = vector.broadcast %cst_87 : f32 to vector<64x32xf32>
    %170 = arith.maximumf %168, %169 : vector<64x32xf32>
    %c0_88 = arith.constant 0 : index
    %c0_89 = arith.constant 0 : index
    %171 = vector.load %arg8[%c0_88, %c0_89] : memref<32x128xf32, #tpu.memory_space<vmem>>, vector<32x128xf32>
    %cst_90 = arith.constant dense<0.000000e+00> : vector<64x128xf32>
    %172 = tpu.matmul %170, %171, %cst_90 {dimension_numbers = #tpu.dot_dimension_numbers<[1], [0], [0], [1], [0, 0, 1, 1], [], []>} : vector<64x32xf32>, vector<32x128xf32>, vector<64x128xf32> -> vector<64x128xf32>
    %c0_91 = arith.constant 0 : index
    %c0_92 = arith.constant 0 : index
    %173 = vector.load %arg9[%c0_91, %c0_92] : memref<1x128xf32, #tpu.memory_space<vmem>>, vector<1x128xf32>
    %174 = vector.broadcast %173 : vector<1x128xf32> to vector<64x128xf32>
    %175 = arith.addf %172, %174 : vector<64x128xf32>
    %c0_93 = arith.constant 0 : index
    %c0_94 = arith.constant 0 : index
    %176 = vector.load %arg10[%c0_93, %c0_94] : memref<64x128xf32, #tpu.memory_space<vmem>>, vector<64x128xf32>
    tpu.vector_store %arg10[%c0_93, %c0_94], %175 {strides = array<i32>} : memref<64x128xf32, #tpu.memory_space<vmem>>, vector<64x128xf32>,
    return
  }
}

</mosaic_0001>

<llo_original>
// kernel: policy_forward.1
$region0: #{policy_forward.1}
  #allocation0 [shape = 'u32[]', space=smem, size = 0x4, offset = 0x4, fixed_abs, tag = 'smem constant byte address 0x4 - core index']
  #allocation1 [shape = 'u32[144,128]{1,0:T(1,128)}', space=vmem, size = 0x12000, scoped, tag = 'internal scratch']
  #allocation2 [shape = 'f32[64,128]{1,0:T(8,128)}', space=vmem, size = 0x8000, scoped, tag = 'scratch operand']
  #allocation3 [shape = 'f32[64,32]{1,0:T(8,128)}', space=vmem, size = 0x8000, scoped, tag = 'scratch operand']
  %s0 = inlined_call_operand.vmem [shape: f32[64,4], index: 0, kind: input, shape index: {}]
  %s1 = inlined_call_operand.vmem [shape: f32[8,32], index: 1, kind: input, shape index: {}]
  %s2 = inlined_call_operand.vmem [shape: f32[8,32], index: 2, kind: input, shape index: {}]
  %s3 = inlined_call_operand.vmem [shape: f32[4,128], index: 3, kind: input, shape index: {}]
  %s4 = inlined_call_operand.vmem [shape: f32[32,128], index: 4, kind: input, shape index: {}]
  %s5 = inlined_call_operand.vmem [shape: f32[1,128], index: 5, kind: input, shape index: {}]
  %s6 = inlined_call_operand.vmem [shape: f32[32,32], index: 6, kind: input, shape index: {}]
  %s7 = inlined_call_operand.vmem [shape: f32[1,32], index: 7, kind: input, shape index: {}]
  %s8 = inlined_call_operand.vmem [shape: f32[32,128], index: 8, kind: input, shape index: {}]
  %s9 = inlined_call_operand.vmem [shape: f32[1,128], index: 9, kind: input, shape index: {}]
  %s10 = inlined_call_operand.vmem [shape: f32[64,128], index: 10, kind: output, shape index: {0}]
  %s11 = inlined_call_operand.vmem [shape: f32[8,32], index: 11, kind: output, shape index: {1}]
  %s12 = inlined_call_operand.vmem [shape: f32[8,32], index: 12, kind: output, shape index: {2}]
  %13 = xla_tuple %s10, %s11, %s12
  %s14 = sld [smem:[#allocation0]]
  $region66: #{policy_forward.1} parent=0
    _
  %s16 = ssub.s32 1, %s14
  %s17 = scalar_select 0, %s16, %s14
  // Predicated region
  $region2: #{policy_forward.1} parent=0 // pred_check
    _
  $region3: #{policy_forward.1} parent=0 // pred_check_branch
    %19 = sbr.rel (0) target = $region5
  $region4: #{policy_forward.1} parent=0 // pred_region
    _
  $region5: #{policy_forward.1} parent=0 // pred_fallthru
    _
  // Predicated region
  $region6: #{policy_forward.1} parent=0 // pred_check
    _
  $region7: #{policy_forward.1} parent=0 // pred_check_branch
    %21 = sbr.rel (0) target = $region9
  $region8: #{policy_forward.1} parent=0 // pred_region
    _
  $region9: #{policy_forward.1} parent=0 // pred_fallthru
    _
  // Predicated region
  $region10: #{policy_forward.1} parent=0 // pred_check
    _
  $region11: #{policy_forward.1} parent=0 // pred_check_branch
    %23 = sbr.rel (0) target = $region13
  $region12: #{policy_forward.1} parent=0 // pred_region
    _
  $region13: #{policy_forward.1} parent=0 // pred_fallthru
    _
  // Predicated region
  $region14: #{policy_forward.1} parent=0 // pred_check
    _
  $region15: #{policy_forward.1} parent=0 // pred_check_branch
    %25 = sbr.rel (0) target = $region17
  $region16: #{policy_forward.1} parent=0 // pred_region
    _
  $region17: #{policy_forward.1} parent=0 // pred_fallthru
    _
  // Predicated region
  $region18: #{policy_forward.1} parent=0 // pred_check
    _
  $region19: #{policy_forward.1} parent=0 // pred_check_branch
    %27 = sbr.rel (0) target = $region21
  $region20: #{policy_forward.1} parent=0 // pred_region
    _
  $region21: #{policy_forward.1} parent=0 // pred_fallthru
    _
  // Predicated region
  $region22: #{policy_forward.1} parent=0 // pred_check
    _
  $region23: #{policy_forward.1} parent=0 // pred_check_branch
    %29 = sbr.rel (0) target = $region25
  $region24: #{policy_forward.1} parent=0 // pred_region
    _
  $region25: #{policy_forward.1} parent=0 // pred_fallthru
    _
  // Predicated region
  $region26: #{policy_forward.1} parent=0 // pred_check
    _
  $region27: #{policy_forward.1} parent=0 // pred_check_branch
    %31 = sbr.rel (0) target = $region29
  $region28: #{policy_forward.1} parent=0 // pred_region
    _
  $region29: #{policy_forward.1} parent=0 // pred_fallthru
    _
  // Predicated region
  $region30: #{policy_forward.1} parent=0 // pred_check
    _
  $region31: #{policy_forward.1} parent=0 // pred_check_branch
    %33 = sbr.rel (0) target = $region33
  $region32: #{policy_forward.1} parent=0 // pred_region
    _
  $region33: #{policy_forward.1} parent=0 // pred_fallthru
    _
  // Predicated region
  $region34: #{policy_forward.1} parent=0 // pred_check
    _
  $region35: #{policy_forward.1} parent=0 // pred_check_branch
    %35 = sbr.rel (0) target = $region37
  $region36: #{policy_forward.1} parent=0 // pred_region
    _
  $region37: #{policy_forward.1} parent=0 // pred_fallthru
    _
  // Predicated region
  $region38: #{policy_forward.1} parent=0 // pred_check
    _
  $region39: #{policy_forward.1} parent=0 // pred_check_branch
    %37 = sbr.rel (0) target = $region41
  $region40: #{policy_forward.1} parent=0 // pred_region
    _
  $region41: #{policy_forward.1} parent=0 // pred_fallthru
    _
  %v38 = vld [vmem:[%s0] sm:$0xff]
  %v39 = vld [vmem:[%s0 + $0x8] sm:$0xff]
  %v40 = vld [vmem:[%s0 + $0x10] sm:$0xff]
  %v41 = vld [vmem:[%s0 + $0x18] sm:$0xff]
  %v42 = vld [vmem:[%s0 + $0x20] sm:$0xff]
  %v43 = vld [vmem:[%s0 + $0x28] sm:$0xff]
  %v44 = vld [vmem:[%s0 + $0x30] sm:$0xff]
  %v45 = vld [vmem:[%s0 + $0x38] sm:$0xff]
  %v46 = vld [vmem:[%s3] sm:$0xf]
  %v47 = vld [vmem:[%s5] sm:$0x1]
  %v49 = vlaneseq
  %v50 = vshrl.u32 %v49, 7
  %v51 = vsub.s32 0, %v50
  %v52 = vrot.slane %v47, %v51
  %vm54 = vcmask 31744
  %v56 = vsel %vm54, %v38, 0
  %v59 = vsel %vm54, %v39, 0
  %v62 = vsel %vm54, %v40, 0
  %v65 = vsel %vm54, %v41, 0
  %v68 = vsel %vm54, %v42, 0
  %v71 = vsel %vm54, %v43, 0
  %v74 = vsel %vm54, %v44, 0
  %v77 = vsel %vm54, %v45, 0
  %vm79 = vcmask 1043456
  %v81 = vsel %vm79, %v46, 0
  %83 = vmatprep.subr.mxu0 0.0
  %84 = vmatpush1.msra.mxu0 %v81
  %85 = vmatprep.subr.mxu0 0.0
  %86 = vmatpush1.msra.mxu0 0.0
  %87 = vmatprep.subr.mxu0 0.0
  %88 = vmatpush1.msra.mxu0 0.0
  %89 = vmatprep.subr.mxu0 0.0
  %90 = vmatpush1.msra.mxu0 0.0
  %91 = vmatprep.subr.mxu0 0.0
  %92 = vmatpush1.msra.mxu0 0.0
  %93 = vmatprep.subr.mxu0 0.0
  %94 = vmatpush1.msra.mxu0 0.0
  %95 = vmatprep.subr.mxu0 0.0
  %96 = vmatpush1.msra.mxu0 0.0
  %97 = vmatprep.subr.mxu0 0.0
  %98 = vmatpush1.msra.mxu0 0.0
  %99 = vmatprep.subr.mxu0 0.0
  %100 = vmatpush1.msra.mxu0 0.0
  %101 = vmatprep.subr.mxu0 0.0
  %102 = vmatpush1.msra.mxu0 0.0
  %103 = vmatprep.subr.mxu0 0.0
  %104 = vmatpush1.msra.mxu0 0.0
  %105 = vmatprep.subr.mxu0 0.0
  %106 = vmatpush1.msra.mxu0 0.0
  %107 = vmatprep.subr.mxu0 0.0
  %108 = vmatpush1.msra.mxu0 0.0
  %109 = vmatprep.subr.mxu0 0.0
  %110 = vmatpush1.msra.mxu0 0.0
  %111 = vmatprep.subr.mxu0 0.0
  %112 = vmatpush1.msra.mxu0 0.0
  %113 = vmatprep.subr.mxu0 0.0
  %114 = vmatpush1.msra.mxu0 0.0
  %115 = vmatprep.subr.mxu0 0.0
  %116 = vmatpush1.msra.mxu0 0.0
  %117 = vmatprep.subr.mxu0 0.0
  %118 = vmatpush1.msra.mxu0 0.0
  %119 = vmatprep.subr.mxu0 0.0
  %120 = vmatpush1.msra.mxu0 0.0
  %121 = vmatprep.subr.mxu0 0.0
  %122 = vmatpush1.msra.mxu0 0.0
  %123 = vmatprep.subr.mxu0 0.0
  %124 = vmatpush1.msra.mxu0 0.0
  %125 = vmatprep.subr.mxu0 0.0
  %126 = vmatpush1.msra.mxu0 0.0
  %127 = vmatprep.subr.mxu0 0.0
  %128 = vmatpush1.msra.mxu0 0.0
  %129 = vmatprep.subr.mxu0 0.0
  %130 = vmatpush1.msra.mxu0 0.0
  %131 = vmatprep.subr.mxu0 0.0
  %132 = vmatpush1.msra.mxu0 0.0
  %133 = vmatprep.subr.mxu0 0.0
  %134 = vmatpush1.msra.mxu0 0.0
  %135 = vmatprep.subr.mxu0 0.0
  %136 = vmatpush1.msra.mxu0 0.0
  %137 = vmatprep.subr.mxu0 0.0
  %138 = vmatpush1.msra.mxu0 0.0
  %139 = vmatprep.subr.mxu0 0.0
  %140 = vmatpush1.msra.mxu0 0.0
  %141 = vmatprep.subr.mxu0 0.0
  %142 = vmatpush1.msra.mxu0 0.0
  %143 = vmatprep.subr.mxu0 0.0
  %144 = vmatpush1.msra.mxu0 0.0
  %145 = vmatprep.subr.mxu0 0.0
  %146 = vmatpush1.msra.mxu0 0.0
  %147 = vmatprep.mubr.f32.mxu0 0.0
  %148 = vmatmul.mubr.f32.gmra.mrb[0].mxu0 %v56
  %v149 = vpop.f32.mrb[0].mxu0
  %v150 = vadd.f32 %v52, %v149
  %v151 = vpop.f32.mrb[0].mxu0
  %152 = vmatprep.mubr.f32.mxu0 0.0
  %153 = vmatmul.mubr.f32.gmra.mrb[0].mxu0 %v59
  %v154 = vpop.f32.mrb[0].mxu0
  %v155 = vadd.f32 %v52, %v154
  %v156 = vpop.f32.mrb[0].mxu0
  %157 = vmatprep.mubr.f32.mxu0 0.0
  %158 = vmatmul.mubr.f32.gmra.mrb[0].mxu0 %v62
  %v159 = vpop.f32.mrb[0].mxu0
  %v160 = vadd.f32 %v52, %v159
  %v161 = vpop.f32.mrb[0].mxu0
  %162 = vmatprep.mubr.f32.mxu0 0.0
  %163 = vmatmul.mubr.f32.gmra.mrb[0].mxu0 %v65
  %v164 = vpop.f32.mrb[0].mxu0
  %v165 = vadd.f32 %v52, %v164
  %v166 = vpop.f32.mrb[0].mxu0
  %167 = vmatprep.mubr.f32.mxu0 0.0
  %168 = vmatmul.mubr.f32.gmra.mrb[0].mxu0 %v68
  %v169 = vpop.f32.mrb[0].mxu0
  %v170 = vadd.f32 %v52, %v169
  %v171 = vpop.f32.mrb[0].mxu0
  %172 = vmatprep.mubr.f32.mxu0 0.0
  %173 = vmatmul.mubr.f32.gmra.mrb[0].mxu0 %v71
  %v174 = vpop.f32.mrb[0].mxu0
  %v175 = vadd.f32 %v52, %v174
  %v176 = vpop.f32.mrb[0].mxu0
  %177 = vmatprep.mubr.f32.mxu0 0.0
  %178 = vmatmul.mubr.f32.gmra.mrb[0].mxu0 %v74
  %v179 = vpop.f32.mrb[0].mxu0
  %v180 = vadd.f32 %v52, %v179
  %v181 = vpop.f32.mrb[0].mxu0
  %182 = vmatprep.mubr.f32.mxu0 0.0
  %183 = vmatmul.mubr.f32.gmra.mrb[0].mxu0 %v77
  %v184 = vpop.f32.mrb[0].mxu0
  %v185 = vadd.f32 %v52, %v184
  %v186 = vpop.f32.mrb[0].mxu0
  %187 = vdwg.mxu0
  %188 = vst [vmem:[#allocation2] sm:$0xff] %v150
  %189 = vst [vmem:[#allocation2 + $0x8] sm:$0xff] %v155
  %190 = vst [vmem:[#allocation2 + $0x10] sm:$0xff] %v160
  %191 = vst [vmem:[#allocation2 + $0x18] sm:$0xff] %v165
  %192 = vst [vmem:[#allocation2 + $0x20] sm:$0xff] %v170
  %193 = vst [vmem:[#allocation2 + $0x28] sm:$0xff] %v175
  %194 = vst [vmem:[#allocation2 + $0x30] sm:$0xff] %v180
  %195 = vst [vmem:[#allocation2 + $0x38] sm:$0xff] %v185
  %v196 = vld [vmem:[%s1] sm:$0xff]
  %v197 = vld [vmem:[%s2] sm:$0xff]
  %v198 = vld [vmem:[#allocation2] sm:$0xff]
  %v199 = vld [vmem:[%s4] sm:$0xff]
  %v200 = vld [vmem:[%s4 + $0x8] sm:$0xff]
  %v201 = vld [vmem:[%s4 + $0x10] sm:$0xff]
  %v202 = vld [vmem:[%s4 + $0x18] sm:$0xff]
  %vm203 = vcmask 261120
  %v205 = vsel %vm203, %v196, 0
  %207 = vmatprep.subr.mxu0 0.0
  %208 = vmatpush1.msra.mxu0 %v199
  %209 = vmatprep.subr.mxu0 0.0
  %210 = vmatpush1.msra.mxu0 %v200
  %211 = vmatprep.subr.mxu0 0.0
  %212 = vmatpush1.msra.mxu0 %v201
  %213 = vmatprep.subr.mxu0 0.0
  %214 = vmatpush1.msra.mxu0 %v202
  %215 = vmatprep.subr.mxu0 0.0
  %216 = vmatpush1.msra.mxu0 0.0
  %217 = vmatprep.subr.mxu0 0.0
  %218 = vmatpush1.msra.mxu0 0.0
  %219 = vmatprep.subr.mxu0 0.0
  %220 = vmatpush1.msra.mxu0 0.0
  %221 = vmatprep.subr.mxu0 0.0
  %222 = vmatpush1.msra.mxu0 0.0
  %223 = vmatprep.subr.mxu0 0.0
  %224 = vmatpush1.msra.mxu0 0.0
  %225 = vmatprep.subr.mxu0 0.0
  %226 = vmatpush1.msra.mxu0 0.0
  %227 = vmatprep.subr.mxu0 0.0
  %228 = vmatpush1.msra.mxu0 0.0
  %229 = vmatprep.subr.mxu0 0.0
  %230 = vmatpush1.msra.mxu0 0.0
  %231 = vmatprep.subr.mxu0 0.0
  %232 = vmatpush1.msra.mxu0 0.0
  %233 = vmatprep.subr.mxu0 0.0
  %234 = vmatpush1.msra.mxu0 0.0
  %235 = vmatprep.subr.mxu0 0.0
  %236 = vmatpush1.msra.mxu0 0.0
  %237 = vmatprep.subr.mxu0 0.0
  %238 = vmatpush1.msra.mxu0 0.0
  %239 = vmatprep.subr.mxu0 0.0
  %240 = vmatpush1.msra.mxu0 0.0
  %241 = vmatprep.subr.mxu0 0.0
  %242 = vmatpush1.msra.mxu0 0.0
  %243 = vmatprep.subr.mxu0 0.0
  %244 = vmatpush1.msra.mxu0 0.0
  %245 = vmatprep.subr.mxu0 0.0
  %246 = vmatpush1.msra.mxu0 0.0
  %247 = vmatprep.subr.mxu0 0.0
  %248 = vmatpush1.msra.mxu0 0.0
  %249 = vmatprep.subr.mxu0 0.0
  %250 = vmatpush1.msra.mxu0 0.0
  %251 = vmatprep.subr.mxu0 0.0
  %252 = vmatpush1.msra.mxu0 0.0
  %253 = vmatprep.subr.mxu0 0.0
  %254 = vmatpush1.msra.mxu0 0.0
  %255 = vmatprep.subr.mxu0 0.0
  %256 = vmatpush1.msra.mxu0 0.0
  %257 = vmatprep.subr.mxu0 0.0
  %258 = vmatpush1.msra.mxu0 0.0
  %259 = vmatprep.subr.mxu0 0.0
  %260 = vmatpush1.msra.mxu0 0.0
  %261 = vmatprep.subr.mxu0 0.0
  %262 = vmatpush1.msra.mxu0 0.0
  %263 = vmatprep.subr.mxu0 0.0
  %264 = vmatpush1.msra.mxu0 0.0
  %265 = vmatprep.subr.mxu0 0.0
  %266 = vmatpush1.msra.mxu0 0.0
  %267 = vmatprep.subr.mxu0 0.0
  %268 = vmatpush1.msra.mxu0 0.0
  %269 = vmatprep.subr.mxu0 0.0
  %270 = vmatpush1.msra.mxu0 0.0
  %271 = vmatprep.mubr.f32.mxu0 0.0
  %272 = vmatmul.mubr.f32.gmra.mrb[0].mxu0 %v205
  %v273 = vpop.f32.mrb[0].mxu0
  %v274 = vadd.f32 0.0, %v273
  %v275 = vpop.f32.mrb[0].mxu0
  %276 = vdwg.mxu0
  %v277 = vadd.f32 %v198, %v274
  %v278 = vtanh.pop %v277
  %v279 = vmul.f32 %v278, 0.5
  %v280 = vadd.f32 %v279, 0.5
  %282 = vrot.lane.b32.xlu0 %v197, 32
  %v283 = vpop.permute.xlu0 %282
  %v285 = vmul.f32 %v280, %v283
  %287 = vrot.lane.b32.xlu0 %v278, 64
  %v288 = vpop.permute.xlu0 %287
  %v290 = vmul.f32 %v280, %v288
  %292 = vrot.lane.b32.xlu0 %v290, 32
  %v293 = vpop.permute.xlu0 %292
  %v295 = vadd.f32 %v285, %v293
  %v296 = vtanh.pop %v295
  %298 = vrot.lane.b32.xlu0 %v296, 64
  %v299 = vpop.permute.xlu0 %298
  %v301 = vmul.f32 %v280, %v299
  %303 = vrot.lane.b32.xlu0 %v301, 32
  %v304 = vpop.permute.xlu0 %303
  %306 = vst.msk [vmem:[#allocation3] sm:$0xff] %vm203, %v304
  %v307 = vld [vmem:[#allocation2 + $0x8] sm:$0xff]
  %v308 = vld [vmem:[%s4] sm:$0xff]
  %v309 = vld [vmem:[%s4 + $0x8] sm:$0xff]
  %v310 = vld [vmem:[%s4 + $0x10] sm:$0xff]
  %v311 = vld [vmem:[%s4 + $0x18] sm:$0xff]
  %v312 = vsel %vm203, %v304, 0
  %314 = vmatprep.subr.mxu0 0.0
  %315 = vmatpush1.msra.mxu0 %v308
  %316 = vmatprep.subr.mxu0 0.0
  %317 = vmatpush1.msra.mxu0 %v309
  %318 = vmatprep.subr.mxu0 0.0
  %319 = vmatpush1.msra.mxu0 %v310
  %320 = vmatprep.subr.mxu0 0.0
  %321 = vmatpush1.msra.mxu0 %v311
  %322 = vmatprep.subr.mxu0 0.0
  %323 = vmatpush1.msra.mxu0 0.0
  %324 = vmatprep.subr.mxu0 0.0
  %325 = vmatpush1.msra.mxu0 0.0
  %326 = vmatprep.subr.mxu0 0.0
  %327 = vmatpush1.msra.mxu0 0.0
  %328 = vmatprep.subr.mxu0 0.0
  %329 = vmatpush1.msra.mxu0 0.0
  %330 = vmatprep.subr.mxu0 0.0
  %331 = vmatpush1.msra.mxu0 0.0
  %332 = vmatprep.subr.mxu0 0.0
  %333 = vmatpush1.msra.mxu0 0.0
  %334 = vmatprep.subr.mxu0 0.0
  %335 = vmatpush1.msra.mxu0 0.0
  %336 = vmatprep.subr.mxu0 0.0
  %337 = vmatpush1.msra.mxu0 0.0
  %338 = vmatprep.subr.mxu0 0.0
  %339 = vmatpush1.msra.mxu0 0.0
  %340 = vmatprep.subr.mxu0 0.0
  %341 = vmatpush1.msra.mxu0 0.0
  %342 = vmatprep.subr.mxu0 0.0
  %343 = vmatpush1.msra.mxu0 0.0
  %344 = vmatprep.subr.mxu0 0.0
  %345 = vmatpush1.msra.mxu0 0.0
  %346 = vmatprep.subr.mxu0 0.0
  %347 = vmatpush1.msra.mxu0 0.0
  %348 = vmatprep.subr.mxu0 0.0
  %349 = vmatpush1.msra.mxu0 0.0
  %350 = vmatprep.subr.mxu0 0.0
  %351 = vmatpush1.msra.mxu0 0.0
  %352 = vmatprep.subr.mxu0 0.0
  %353 = vmatpush1.msra.mxu0 0.0
  %354 = vmatprep.subr.mxu0 0.0
  %355 = vmatpush1.msra.mxu0 0.0
  %356 = vmatprep.subr.mxu0 0.0
  %357 = vmatpush1.msra.mxu0 0.0
  %358 = vmatprep.subr.mxu0 0.0
  %359 = vmatpush1.msra.mxu0 0.0
  %360 = vmatprep.subr.mxu0 0.0
  %361 = vmatpush1.msra.mxu0 0.0
  %362 = vmatprep.subr.mxu0 0.0
  %363 = vmatpush1.msra.mxu0 0.0
  %364 = vmatprep.subr.mxu0 0.0
  %365 = vmatpush1.msra.mxu0 0.0
  %366 = vmatprep.subr.mxu0 0.0
  %367 = vmatpush1.msra.mxu0 0.0
  %368 = vmatprep.subr.mxu0 0.0
  %369 = vmatpush1.msra.mxu0 0.0
  %370 = vmatprep.subr.mxu0 0.0
  %371 = vmatpush1.msra.mxu0 0.0
  %372 = vmatprep.subr.mxu0 0.0
  %373 = vmatpush1.msra.mxu0 0.0
  %374 = vmatprep.subr.mxu0 0.0
  %375 = vmatpush1.msra.mxu0 0.0
  %376 = vmatprep.subr.mxu0 0.0
  %377 = vmatpush1.msra.mxu0 0.0
  %378 = vmatprep.mubr.f32.mxu0 0.0
  %379 = vmatmul.mubr.f32.gmra.mrb[0].mxu0 %v312
  %v380 = vpop.f32.mrb[0].mxu0
  %v381 = vadd.f32 0.0, %v380
  %v382 = vpop.f32.mrb[0].mxu0
  %383 = vdwg.mxu0
  %v384 = vadd.f32 %v307, %v381
  %v385 = vtanh.pop %v384
  %v386 = vmul.f32 %v385, 0.5
  %v387 = vadd.f32 %v386, 0.5
  %v388 = vmul.f32 %v387, %v295
  %390 = vrot.lane.b32.xlu0 %v385, 64
  %v391 = vpop.permute.xlu0 %390
  %v393 = vmul.f32 %v387, %v391
  %395 = vrot.lane.b32.xlu0 %v393, 32
  %v396 = vpop.permute.xlu0 %395
  %v398 = vadd.f32 %v388, %v396
  %v399 = vtanh.pop %v398
  %401 = vrot.lane.b32.xlu0 %v399, 64
  %v402 = vpop.permute.xlu0 %401
  %v404 = vmul.f32 %v387, %v402
  %406 = vrot.lane.b32.xlu0 %v404, 32
  %v407 = vpop.permute.xlu0 %406
  %409 = vst.msk [vmem:[#allocation3 + $0x8] sm:$0xff] %vm203, %v407
  %v410 = vld [vmem:[#allocation2 + $0x10] sm:$0xff]
  %v411 = vld [vmem:[%s4] sm:$0xff]
  %v412 = vld [vmem:[%s4 + $0x8] sm:$0xff]
  %v413 = vld [vmem:[%s4 + $0x10] sm:$0xff]
  %v414 = vld [vmem:[%s4 + $0x18] sm:$0xff]
  %v415 = vsel %vm203, %v407, 0
  %417 = vmatprep.subr.mxu0 0.0
  %418 = vmatpush1.msra.mxu0 %v411
  %419 = vmatprep.subr.mxu0 0.0
  %420 = vmatpush1.msra.mxu0 %v412
  %421 = vmatprep.subr.mxu0 0.0
  %422 = vmatpush1.msra.mxu0 %v413
  %423 = vmatprep.subr.mxu0 0.0
  %424 = vmatpush1.msra.mxu0 %v414
  %425 = vmatprep.subr.mxu0 0.0
  %426 = vmatpush1.msra.mxu0 0.0
  %427 = vmatprep.subr.mxu0 0.0
  %428 = vmatpush1.msra.mxu0 0.0
  %429 = vmatprep.subr.mxu0 0.0
  %430 = vmatpush1.msra.mxu0 0.0
  %431 = vmatprep.subr.mxu0 0.0
  %432 = vmatpush1.msra.mxu0 0.0
  %433 = vmatprep.subr.mxu0 0.0
  %434 = vmatpush1.msra.mxu0 0.0
  %435 = vmatprep.subr.mxu0 0.0
  %436 = vmatpush1.msra.mxu0 0.0
  %437 = vmatprep.subr.mxu0 0.0
  %438 = vmatpush1.msra.mxu0 0.0
  %439 = vmatprep.subr.mxu0 0.0
  %440 = vmatpush1.msra.mxu0 0.0
  %441 = vmatprep.subr.mxu0 0.0
  %442 = vmatpush1.msra.mxu0 0.0
  %443 = vmatprep.subr.mxu0 0.0
  %444 = vmatpush1.msra.mxu0 0.0
  %445 = vmatprep.subr.mxu0 0.0
  %446 = vmatpush1.msra.mxu0 0.0
  %447 = vmatprep.subr.mxu0 0.0
  %448 = vmatpush1.msra.mxu0 0.0
  %449 = vmatprep.subr.mxu0 0.0
  %450 = vmatpush1.msra.mxu0 0.0
  %451 = vmatprep.subr.mxu0 0.0
  %452 = vmatpush1.msra.mxu0 0.0
  %453 = vmatprep.subr.mxu0 0.0
  %454 = vmatpush1.msra.mxu0 0.0
  %455 = vmatprep.subr.mxu0 0.0
  %456 = vmatpush1.msra.mxu0 0.0
  %457 = vmatprep.subr.mxu0 0.0
  %458 = vmatpush1.msra.mxu0 0.0
  %459 = vmatprep.subr.mxu0 0.0
  %460 = vmatpush1.msra.mxu0 0.0
  %461 = vmatprep.subr.mxu0 0.0
  %462 = vmatpush1.msra.mxu0 0.0
  %463 = vmatprep.subr.mxu0 0.0
  %464 = vmatpush1.msra.mxu0 0.0
  %465 = vmatprep.subr.mxu0 0.0
  %466 = vmatpush1.msra.mxu0 0.0
  %467 = vmatprep.subr.mxu0 0.0
  %468 = vmatpush1.msra.mxu0 0.0
  %469 = vmatprep.subr.mxu0 0.0
  %470 = vmatpush1.msra.mxu0 0.0
  %471 = vmatprep.subr.mxu0 0.0
  %472 = vmatpush1.msra.mxu0 0.0
  %473 = vmatprep.subr.mxu0 0.0
  %474 = vmatpush1.msra.mxu0 0.0
  %475 = vmatprep.subr.mxu0 0.0
  %476 = vmatpush1.msra.mxu0 0.0
  %477 = vmatprep.subr.mxu0 0.0
  %478 = vmatpush1.msra.mxu0 0.0
  %479 = vmatprep.subr.mxu0 0.0
  %480 = vmatpush1.msra.mxu0 0.0
  %481 = vmatprep.mubr.f32.mxu0 0.0
  %482 = vmatmul.mubr.f32.gmra.mrb[0].mxu0 %v415
  %v483 = vpop.f32.mrb[0].mxu0
  %v484 = vadd.f32 0.0, %v483
  %v485 = vpop.f32.mrb[0].mxu0
  %486 = vdwg.mxu0
  %v487 = vadd.f32 %v410, %v484
  %v488 = vtanh.pop %v487
  %v489 = vmul.f32 %v488, 0.5
  %v490 = vadd.f32 %v489, 0.5
  %v491 = vmul.f32 %v490, %v398
  %493 = vrot.lane.b32.xlu0 %v488, 64
  %v494 = vpop.permute.xlu0 %493
  %v496 = vmul.f32 %v490, %v494
  %498 = vrot.lane.b32.xlu0 %v496, 32
  %v499 = vpop.permute.xlu0 %498
  %v501 = vadd.f32 %v491, %v499
  %v502 = vtanh.pop %v501
  %504 = vrot.lane.b32.xlu0 %v502, 64
  %v505 = vpop.permute.xlu0 %504
  %v507 = vmul.f32 %v490, %v505
  %509 = vrot.lane.b32.xlu0 %v507, 32
  %v510 = vpop.permute.xlu0 %509
  %512 = vst.msk [vmem:[#allocation3 + $0x10] sm:$0xff] %vm203, %v510
  %v513 = vld [vmem:[#allocation2 + $0x18] sm:$0xff]
  %v514 = vld [vmem:[%s4] sm:$0xff]
  %v515 = vld [vmem:[%s4 + $0x8] sm:$0xff]
  %v516 = vld [vmem:[%s4 + $0x10] sm:$0xff]
  %v517 = vld [vmem:[%s4 + $0x18] sm:$0xff]
  %v518 = vsel %vm203, %v510, 0
  %520 = vmatprep.subr.mxu0 0.0
  %521 = vmatpush1.msra.mxu0 %v514
  %522 = vmatprep.subr.mxu0 0.0
  %523 = vmatpush1.msra.mxu0 %v515
  %524 = vmatprep.subr.mxu0 0.0
  %525 = vmatpush1.msra.mxu0 %v516
  %526 = vmatprep.subr.mxu0 0.0
  %527 = vmatpush1.msra.mxu0 %v517
  %528 = vmatprep.subr.mxu0 0.0
  %529 = vmatpush1.msra.mxu0 0.0
  %530 = vmatprep.subr.mxu0 0.0
  %531 = vmatpush1.msra.mxu0 0.0
  %532 = vmatprep.subr.mxu0 0.0
  %533 = vmatpush1.msra.mxu0 0.0
  %534 = vmatprep.subr.mxu0 0.0
  %535 = vmatpush1.msra.mxu0 0.0
  %536 = vmatprep.subr.mxu0 0.0
  %537 = vmatpush1.msra.mxu0 0.0
  %538 = vmatprep.subr.mxu0 0.0
  %539 = vmatpush1.msra.mxu0 0.0
  %540 = vmatprep.subr.mxu0 0.0
  %541 = vmatpush1.msra.mxu0 0.0
  %542 = vmatprep.subr.mxu0 0.0
  %543 = vmatpush1.msra.mxu0 0.0
  %544 = vmatprep.subr.mxu0 0.0
  %545 = vmatpush1.msra.mxu0 0.0
  %546 = vmatprep.subr.mxu0 0.0
  %547 = vmatpush1.msra.mxu0 0.0
  %548 = vmatprep.subr.mxu0 0.0
  %549 = vmatpush1.msra.mxu0 0.0
  %550 = vmatprep.subr.mxu0 0.0
  %551 = vmatpush1.msra.mxu0 0.0
  %552 = vmatprep.subr.mxu0 0.0
  %553 = vmatpush1.msra.mxu0 0.0
  %554 = vmatprep.subr.mxu0 0.0
  %555 = vmatpush1.msra.mxu0 0.0
  %556 = vmatprep.subr.mxu0 0.0
  %557 = vmatpush1.msra.mxu0 0.0
  %558 = vmatprep.subr.mxu0 0.0
  %559 = vmatpush1.msra.mxu0 0.0
  %560 = vmatprep.subr.mxu0 0.0
  %561 = vmatpush1.msra.mxu0 0.0
  %562 = vmatprep.subr.mxu0 0.0
  %563 = vmatpush1.msra.mxu0 0.0
  %564 = vmatprep.subr.mxu0 0.0
  %565 = vmatpush1.msra.mxu0 0.0
  %566 = vmatprep.subr.mxu0 0.0
  %567 = vmatpush1.msra.mxu0 0.0
  %568 = vmatprep.subr.mxu0 0.0
  %569 = vmatpush1.msra.mxu0 0.0
  %570 = vmatprep.subr.mxu0 0.0
  %571 = vmatpush1.msra.mxu0 0.0
  %572 = vmatprep.subr.mxu0 0.0
  %573 = vmatpush1.msra.mxu0 0.0
  %574 = vmatprep.subr.mxu0 0.0
  %575 = vmatpush1.msra.mxu0 0.0
  %576 = vmatprep.subr.mxu0 0.0
  %577 = vmatpush1.msra.mxu0 0.0
  %578 = vmatprep.subr.mxu0 0.0
  %579 = vmatpush1.msra.mxu0 0.0
  %580 = vmatprep.subr.mxu0 0.0
  %581 = vmatpush1.msra.mxu0 0.0
  %582 = vmatprep.subr.mxu0 0.0
  %583 = vmatpush1.msra.mxu0 0.0
  %584 = vmatprep.mubr.f32.mxu0 0.0
  %585 = vmatmul.mubr.f32.gmra.mrb[0].mxu0 %v518
  %v586 = vpop.f32.mrb[0].mxu0
  %v587 = vadd.f32 0.0, %v586
  %v588 = vpop.f32.mrb[0].mxu0
  %589 = vdwg.mxu0
  %v590 = vadd.f32 %v513, %v587
  %v591 = vtanh.pop %v590
  %v592 = vmul.f32 %v591, 0.5
  %v593 = vadd.f32 %v592, 0.5
  %v594 = vmul.f32 %v593, %v501
  %596 = vrot.lane.b32.xlu0 %v591, 64
  %v597 = vpop.permute.xlu0 %596
  %v599 = vmul.f32 %v593, %v597
  %601 = vrot.lane.b32.xlu0 %v599, 32
  %v602 = vpop.permute.xlu0 %601
  %v604 = vadd.f32 %v594, %v602
  %v605 = vtanh.pop %v604
  %607 = vrot.lane.b32.xlu0 %v605, 64
  %v608 = vpop.permute.xlu0 %607
  %v610 = vmul.f32 %v593, %v608
  %612 = vrot.lane.b32.xlu0 %v610, 32
  %v613 = vpop.permute.xlu0 %612
  %615 = vst.msk [vmem:[#allocation3 + $0x18] sm:$0xff] %vm203, %v613
  %v616 = vld [vmem:[#allocation2 + $0x20] sm:$0xff]
  %v617 = vld [vmem:[%s4] sm:$0xff]
  %v618 = vld [vmem:[%s4 + $0x8] sm:$0xff]
  %v619 = vld [vmem:[%s4 + $0x10] sm:$0xff]
  %v620 = vld [vmem:[%s4 + $0x18] sm:$0xff]
  %v621 = vsel %vm203, %v613, 0
  %623 = vmatprep.subr.mxu0 0.0
  %624 = vmatpush1.msra.mxu0 %v617
  %625 = vmatprep.subr.mxu0 0.0
  %626 = vmatpush1.msra.mxu0 %v618
  %627 = vmatprep.subr.mxu0 0.0
  %628 = vmatpush1.msra.mxu0 %v619
  %629 = vmatprep.subr.mxu0 0.0
  %630 = vmatpush1.msra.mxu0 %v620
  %631 = vmatprep.subr.mxu0 0.0
  %632 = vmatpush1.msra.mxu0 0.0
  %633 = vmatprep.subr.mxu0 0.0
  %634 = vmatpush1.msra.mxu0 0.0
  %635 = vmatprep.subr.mxu0 0.0
  %636 = vmatpush1.msra.mxu0 0.0
  %637 = vmatprep.subr.mxu0 0.0
  %638 = vmatpush1.msra.mxu0 0.0
  %639 = vmatprep.subr.mxu0 0.0
  %640 = vmatpush1.msra.mxu0 0.0
  %641 = vmatprep.subr.mxu0 0.0
  %642 = vmatpush1.msra.mxu0 0.0
  %643 = vmatprep.subr.mxu0 0.0
  %644 = vmatpush1.msra.mxu0 0.0
  %645 = vmatprep.subr.mxu0 0.0
  %646 = vmatpush1.msra.mxu0 0.0
  %647 = vmatprep.subr.mxu0 0.0
  %648 = vmatpush1.msra.mxu0 0.0
  %649 = vmatprep.subr.mxu0 0.0
  %650 = vmatpush1.msra.mxu0 0.0
  %651 = vmatprep.subr.mxu0 0.0
  %652 = vmatpush1.msra.mxu0 0.0
  %653 = vmatprep.subr.mxu0 0.0
  %654 = vmatpush1.msra.mxu0 0.0
  %655 = vmatprep.subr.mxu0 0.0
  %656 = vmatpush1.msra.mxu0 0.0
  %657 = vmatprep.subr.mxu0 0.0
  %658 = vmatpush1.msra.mxu0 0.0
  %659 = vmatprep.subr.mxu0 0.0
  %660 = vmatpush1.msra.mxu0 0.0
  %661 = vmatprep.subr.mxu0 0.0
  %662 = vmatpush1.msra.mxu0 0.0
  %663 = vmatprep.subr.mxu0 0.0
  %664 = vmatpush1.msra.mxu0 0.0
  %665 = vmatprep.subr.mxu0 0.0
  %666 = vmatpush1.msra.mxu0 0.0
  %667 = vmatprep.subr.mxu0 0.0
  %668 = vmatpush1.msra.mxu0 0.0
  %669 = vmatprep.subr.mxu0 0.0
  %670 = vmatpush1.msra.mxu0 0.0
  %671 = vmatprep.subr.mxu0 0.0
  %672 = vmatpush1.msra.mxu0 0.0
  %673 = vmatprep.subr.mxu0 0.0
  %674 = vmatpush1.msra.mxu0 0.0
  %675 = vmatprep.subr.mxu0 0.0
  %676 = vmatpush1.msra.mxu0 0.0
  %677 = vmatprep.subr.mxu0 0.0
  %678 = vmatpush1.msra.mxu0 0.0
  %679 = vmatprep.subr.mxu0 0.0
  %680 = vmatpush1.msra.mxu0 0.0
  %681 = vmatprep.subr.mxu0 0.0
  %682 = vmatpush1.msra.mxu0 0.0
  %683 = vmatprep.subr.mxu0 0.0
  %684 = vmatpush1.msra.mxu0 0.0
  %685 = vmatprep.subr.mxu0 0.0
  %686 = vmatpush1.msra.mxu0 0.0
  %687 = vmatprep.mubr.f32.mxu0 0.0
  %688 = vmatmul.mubr.f32.gmra.mrb[0].mxu0 %v621
  %v689 = vpop.f32.mrb[0].mxu0
  %v690 = vadd.f32 0.0, %v689
  %v691 = vpop.f32.mrb[0].mxu0
  %692 = vdwg.mxu0
  %v693 = vadd.f32 %v616, %v690
  %v694 = vtanh.pop %v693
  %v695 = vmul.f32 %v694, 0.5
  %v696 = vadd.f32 %v695, 0.5
  %v697 = vmul.f32 %v696, %v604
  %699 = vrot.lane.b32.xlu0 %v694, 64
  %v700 = vpop.permute.xlu0 %699
  %v702 = vmul.f32 %v696, %v700
  %704 = vrot.lane.b32.xlu0 %v702, 32
  %v705 = vpop.permute.xlu0 %704
  %v707 = vadd.f32 %v697, %v705
  %v708 = vtanh.pop %v707
  %710 = vrot.lane.b32.xlu0 %v708, 64
  %v711 = vpop.permute.xlu0 %710
  %v713 = vmul.f32 %v696, %v711
  %715 = vrot.lane.b32.xlu0 %v713, 32
  %v716 = vpop.permute.xlu0 %715
  %718 = vst.msk [vmem:[#allocation3 + $0x20] sm:$0xff] %vm203, %v716
  %v719 = vld [vmem:[#allocation2 + $0x28] sm:$0xff]
  %v720 = vld [vmem:[%s4] sm:$0xff]
  %v721 = vld [vmem:[%s4 + $0x8] sm:$0xff]
  %v722 = vld [vmem:[%s4 + $0x10] sm:$0xff]
  %v723 = vld [vmem:[%s4 + $0x18] sm:$0xff]
  %v724 = vsel %vm203, %v716, 0
  %726 = vmatprep.subr.mxu0 0.0
  %727 = vmatpush1.msra.mxu0 %v720
  %728 = vmatprep.subr.mxu0 0.0
  %729 = vmatpush1.msra.mxu0 %v721
  %730 = vmatprep.subr.mxu0 0.0
  %731 = vmatpush1.msra.mxu0 %v722
  %732 = vmatprep.subr.mxu0 0.0
  %733 = vmatpush1.msra.mxu0 %v723
  %734 = vmatprep.subr.mxu0 0.0
  %735 = vmatpush1.msra.mxu0 0.0
  %736 = vmatprep.subr.mxu0 0.0
  %737 = vmatpush1.msra.mxu0 0.0
  %738 = vmatprep.subr.mxu0 0.0
  %739 = vmatpush1.msra.mxu0 0.0
  %740 = vmatprep.subr.mxu0 0.0
  %741 = vmatpush1.msra.mxu0 0.0
  %742 = vmatprep.subr.mxu0 0.0
  %743 = vmatpush1.msra.mxu0 0.0
  %744 = vmatprep.subr.mxu0 0.0
  %745 = vmatpush1.msra.mxu0 0.0
  %746 = vmatprep.subr.mxu0 0.0
  %747 = vmatpush1.msra.mxu0 0.0
  %748 = vmatprep.subr.mxu0 0.0
  %749 = vmatpush1.msra.mxu0 0.0
  %750 = vmatprep.subr.mxu0 0.0
  %751 = vmatpush1.msra.mxu0 0.0
  %752 = vmatprep.subr.mxu0 0.0
  %753 = vmatpush1.msra.mxu0 0.0
  %754 = vmatprep.subr.mxu0 0.0
  %755 = vmatpush1.msra.mxu0 0.0
  %756 = vmatprep.subr.mxu0 0.0
  %757 = vmatpush1.msra.mxu0 0.0
  %758 = vmatprep.subr.mxu0 0.0
  %759 = vmatpush1.msra.mxu0 0.0
  %760 = vmatprep.subr.mxu0 0.0
  %761 = vmatpush1.msra.mxu0 0.0
  %762 = vmatprep.subr.mxu0 0.0
  %763 = vmatpush1.msra.mxu0 0.0
  %764 = vmatprep.subr.mxu0 0.0
  %765 = vmatpush1.msra.mxu0 0.0
  %766 = vmatprep.subr.mxu0 0.0
  %767 = vmatpush1.msra.mxu0 0.0
  %768 = vmatprep.subr.mxu0 0.0
  %769 = vmatpush1.msra.mxu0 0.0
  %770 = vmatprep.subr.mxu0 0.0
  %771 = vmatpush1.msra.mxu0 0.0
  %772 = vmatprep.subr.mxu0 0.0
  %773 = vmatpush1.msra.mxu0 0.0
  %774 = vmatprep.subr.mxu0 0.0
  %775 = vmatpush1.msra.mxu0 0.0
  %776 = vmatprep.subr.mxu0 0.0
  %777 = vmatpush1.msra.mxu0 0.0
  %778 = vmatprep.subr.mxu0 0.0
  %779 = vmatpush1.msra.mxu0 0.0
  %780 = vmatprep.subr.mxu0 0.0
  %781 = vmatpush1.msra.mxu0 0.0
  %782 = vmatprep.subr.mxu0 0.0
  %783 = vmatpush1.msra.mxu0 0.0
  %784 = vmatprep.subr.mxu0 0.0
  %785 = vmatpush1.msra.mxu0 0.0
  %786 = vmatprep.subr.mxu0 0.0
  %787 = vmatpush1.msra.mxu0 0.0
  %788 = vmatprep.subr.mxu0 0.0
  %789 = vmatpush1.msra.mxu0 0.0
  %790 = vmatprep.mubr.f32.mxu0 0.0
  %791 = vmatmul.mubr.f32.gmra.mrb[0].mxu0 %v724
  %v792 = vpop.f32.mrb[0].mxu0
  %v793 = vadd.f32 0.0, %v792
  %v794 = vpop.f32.mrb[0].mxu0
  %795 = vdwg.mxu0
  %v796 = vadd.f32 %v719, %v793
  %v797 = vtanh.pop %v796
  %v798 = vmul.f32 %v797, 0.5
  %v799 = vadd.f32 %v798, 0.5
  %v800 = vmul.f32 %v799, %v707
  %802 = vrot.lane.b32.xlu0 %v797, 64
  %v803 = vpop.permute.xlu0 %802
  %v805 = vmul.f32 %v799, %v803
  %807 = vrot.lane.b32.xlu0 %v805, 32
  %v808 = vpop.permute.xlu0 %807
  %v810 = vadd.f32 %v800, %v808
  %v811 = vtanh.pop %v810
  %813 = vrot.lane.b32.xlu0 %v811, 64
  %v814 = vpop.permute.xlu0 %813
  %v816 = vmul.f32 %v799, %v814
  %818 = vrot.lane.b32.xlu0 %v816, 32
  %v819 = vpop.permute.xlu0 %818
  %821 = vst.msk [vmem:[#allocation3 + $0x28] sm:$0xff] %vm203, %v819
  %v822 = vld [vmem:[#allocation2 + $0x30] sm:$0xff]
  %v823 = vld [vmem:[%s4] sm:$0xff]
  %v824 = vld [vmem:[%s4 + $0x8] sm:$0xff]
  %v825 = vld [vmem:[%s4 + $0x10] sm:$0xff]
  %v826 = vld [vmem:[%s4 + $0x18] sm:$0xff]
  %v827 = vsel %vm203, %v819, 0
  %829 = vmatprep.subr.mxu0 0.0
  %830 = vmatpush1.msra.mxu0 %v823
  %831 = vmatprep.subr.mxu0 0.0
  %832 = vmatpush1.msra.mxu0 %v824
  %833 = vmatprep.subr.mxu0 0.0
  %834 = vmatpush1.msra.mxu0 %v825
  %835 = vmatprep.subr.mxu0 0.0
  %836 = vmatpush1.msra.mxu0 %v826
  %837 = vmatprep.subr.mxu0 0.0
  %838 = vmatpush1.msra.mxu0 0.0
  %839 = vmatprep.subr.mxu0 0.0
  %840 = vmatpush1.msra.mxu0 0.0
  %841 = vmatprep.subr.mxu0 0.0
  %842 = vmatpush1.msra.mxu0 0.0
  %843 = vmatprep.subr.mxu0 0.0
  %844 = vmatpush1.msra.mxu0 0.0
  %845 = vmatprep.subr.mxu0 0.0
  %846 = vmatpush1.msra.mxu0 0.0
  %847 = vmatprep.subr.mxu0 0.0
  %848 = vmatpush1.msra.mxu0 0.0
  %849 = vmatprep.subr.mxu0 0.0
  %850 = vmatpush1.msra.mxu0 0.0
  %851 = vmatprep.subr.mxu0 0.0
  %852 = vmatpush1.msra.mxu0 0.0
  %853 = vmatprep.subr.mxu0 0.0
  %854 = vmatpush1.msra.mxu0 0.0
  %855 = vmatprep.subr.mxu0 0.0
  %856 = vmatpush1.msra.mxu0 0.0
  %857 = vmatprep.subr.mxu0 0.0
  %858 = vmatpush1.msra.mxu0 0.0
  %859 = vmatprep.subr.mxu0 0.0
  %860 = vmatpush1.msra.mxu0 0.0
  %861 = vmatprep.subr.mxu0 0.0
  %862 = vmatpush1.msra.mxu0 0.0
  %863 = vmatprep.subr.mxu0 0.0
  %864 = vmatpush1.msra.mxu0 0.0
  %865 = vmatprep.subr.mxu0 0.0
  %866 = vmatpush1.msra.mxu0 0.0
  %867 = vmatprep.subr.mxu0 0.0
  %868 = vmatpush1.msra.mxu0 0.0
  %869 = vmatprep.subr.mxu0 0.0
  %870 = vmatpush1.msra.mxu0 0.0
  %871 = vmatprep.subr.mxu0 0.0
  %872 = vmatpush1.msra.mxu0 0.0
  %873 = vmatprep.subr.mxu0 0.0
  %874 = vmatpush1.msra.mxu0 0.0
  %875 = vmatprep.subr.mxu0 0.0
  %876 = vmatpush1.msra.mxu0 0.0
  %877 = vmatprep.subr.mxu0 0.0
  %878 = vmatpush1.msra.mxu0 0.0
  %879 = vmatprep.subr.mxu0 0.0
  %880 = vmatpush1.msra.mxu0 0.0
  %881 = vmatprep.subr.mxu0 0.0
  %882 = vmatpush1.msra.mxu0 0.0
  %883 = vmatprep.subr.mxu0 0.0
  %884 = vmatpush1.msra.mxu0 0.0
  %885 = vmatprep.subr.mxu0 0.0
  %886 = vmatpush1.msra.mxu0 0.0
  %887 = vmatprep.subr.mxu0 0.0
  %888 = vmatpush1.msra.mxu0 0.0
  %889 = vmatprep.subr.mxu0 0.0
  %890 = vmatpush1.msra.mxu0 0.0
  %891 = vmatprep.subr.mxu0 0.0
  %892 = vmatpush1.msra.mxu0 0.0
  %893 = vmatprep.mubr.f32.mxu0 0.0
  %894 = vmatmul.mubr.f32.gmra.mrb[0].mxu0 %v827
  %v895 = vpop.f32.mrb[0].mxu0
  %v896 = vadd.f32 0.0, %v895
  %v897 = vpop.f32.mrb[0].mxu0
  %898 = vdwg.mxu0
  %v899 = vadd.f32 %v822, %v896
  %v900 = vtanh.pop %v899
  %v901 = vmul.f32 %v900, 0.5
  %v902 = vadd.f32 %v901, 0.5
  %v903 = vmul.f32 %v902, %v810
  %905 = vrot.lane.b32.xlu0 %v900, 64
  %v906 = vpop.permute.xlu0 %905
  %v908 = vmul.f32 %v902, %v906
  %910 = vrot.lane.b32.xlu0 %v908, 32
  %v911 = vpop.permute.xlu0 %910
  %v913 = vadd.f32 %v903, %v911
  %v914 = vtanh.pop %v913
  %916 = vrot.lane.b32.xlu0 %v914, 64
  %v917 = vpop.permute.xlu0 %916
  %v919 = vmul.f32 %v902, %v917
  %921 = vrot.lane.b32.xlu0 %v919, 32
  %v922 = vpop.permute.xlu0 %921
  %924 = vst.msk [vmem:[#allocation3 + $0x30] sm:$0xff] %vm203, %v922
  %v925 = vld [vmem:[#allocation2 + $0x38] sm:$0xff]
  %v926 = vld [vmem:[%s4] sm:$0xff]
  %v927 = vld [vmem:[%s4 + $0x8] sm:$0xff]
  %v928 = vld [vmem:[%s4 + $0x10] sm:$0xff]
  %v929 = vld [vmem:[%s4 + $0x18] sm:$0xff]
  %v930 = vsel %vm203, %v922, 0
  %932 = vmatprep.subr.mxu0 0.0
  %933 = vmatpush1.msra.mxu0 %v926
  %934 = vmatprep.subr.mxu0 0.0
  %935 = vmatpush1.msra.mxu0 %v927
  %936 = vmatprep.subr.mxu0 0.0
  %937 = vmatpush1.msra.mxu0 %v928
  %938 = vmatprep.subr.mxu0 0.0
  %939 = vmatpush1.msra.mxu0 %v929
  %940 = vmatprep.subr.mxu0 0.0
  %941 = vmatpush1.msra.mxu0 0.0
  %942 = vmatprep.subr.mxu0 0.0
  %943 = vmatpush1.msra.mxu0 0.0
  %944 = vmatprep.subr.mxu0 0.0
  %945 = vmatpush1.msra.mxu0 0.0
  %946 = vmatprep.subr.mxu0 0.0
  %947 = vmatpush1.msra.mxu0 0.0
  %948 = vmatprep.subr.mxu0 0.0
  %949 = vmatpush1.msra.mxu0 0.0
  %950 = vmatprep.subr.mxu0 0.0
  %951 = vmatpush1.msra.mxu0 0.0
  %952 = vmatprep.subr.mxu0 0.0
  %953 = vmatpush1.msra.mxu0 0.0
  %954 = vmatprep.subr.mxu0 0.0
  %955 = vmatpush1.msra.mxu0 0.0
  %956 = vmatprep.subr.mxu0 0.0
  %957 = vmatpush1.msra.mxu0 0.0
  %958 = vmatprep.subr.mxu0 0.0
  %959 = vmatpush1.msra.mxu0 0.0
  %960 = vmatprep.subr.mxu0 0.0
  %961 = vmatpush1.msra.mxu0 0.0
  %962 = vmatprep.subr.mxu0 0.0
  %963 = vmatpush1.msra.mxu0 0.0
  %964 = vmatprep.subr.mxu0 0.0
  %965 = vmatpush1.msra.mxu0 0.0
  %966 = vmatprep.subr.mxu0 0.0
  %967 = vmatpush1.msra.mxu0 0.0
  %968 = vmatprep.subr.mxu0 0.0
  %969 = vmatpush1.msra.mxu0 0.0
  %970 = vmatprep.subr.mxu0 0.0
  %971 = vmatpush1.msra.mxu0 0.0
  %972 = vmatprep.subr.mxu0 0.0
  %973 = vmatpush1.msra.mxu0 0.0
  %974 = vmatprep.subr.mxu0 0.0
  %975 = vmatpush1.msra.mxu0 0.0
  %976 = vmatprep.subr.mxu0 0.0
  %977 = vmatpush1.msra.mxu0 0.0
  %978 = vmatprep.subr.mxu0 0.0
  %979 = vmatpush1.msra.mxu0 0.0
  %980 = vmatprep.subr.mxu0 0.0
  %981 = vmatpush1.msra.mxu0 0.0
  %982 = vmatprep.subr.mxu0 0.0
  %983 = vmatpush1.msra.mxu0 0.0
  %984 = vmatprep.subr.mxu0 0.0
  %985 = vmatpush1.msra.mxu0 0.0
  %986 = vmatprep.subr.mxu0 0.0
  %987 = vmatpush1.msra.mxu0 0.0
  %988 = vmatprep.subr.mxu0 0.0
  %989 = vmatpush1.msra.mxu0 0.0
  %990 = vmatprep.subr.mxu0 0.0
  %991 = vmatpush1.msra.mxu0 0.0
  %992 = vmatprep.subr.mxu0 0.0
  %993 = vmatpush1.msra.mxu0 0.0
  %994 = vmatprep.subr.mxu0 0.0
  %995 = vmatpush1.msra.mxu0 0.0
  %996 = vmatprep.mubr.f32.mxu0 0.0
  %997 = vmatmul.mubr.f32.gmra.mrb[0].mxu0 %v930
  %v998 = vpop.f32.mrb[0].mxu0
  %v999 = vadd.f32 0.0, %v998
  %v1000 = vpop.f32.mrb[0].mxu0
  %1001 = vdwg.mxu0
  %v1002 = vadd.f32 %v925, %v999
  %v1003 = vtanh.pop %v1002
  %v1004 = vmul.f32 %v1003, 0.5
  %v1005 = vadd.f32 %v1004, 0.5
  %v1006 = vmul.f32 %v1005, %v913
  %1008 = vrot.lane.b32.xlu0 %v1003, 64
  %v1009 = vpop.permute.xlu0 %1008
  %v1011 = vmul.f32 %v1005, %v1009
  %1013 = vrot.lane.b32.xlu0 %v1011, 32
  %v1014 = vpop.permute.xlu0 %1013
  %v1016 = vadd.f32 %v1006, %v1014
  %v1017 = vtanh.pop %v1016
  %1019 = vrot.lane.b32.xlu0 %v1017, 64
  %v1020 = vpop.permute.xlu0 %1019
  %v1022 = vmul.f32 %v1005, %v1020
  %1024 = vrot.lane.b32.xlu0 %v1022, 32
  %v1025 = vpop.permute.xlu0 %1024
  %1027 = vst.msk [vmem:[#allocation3 + $0x38] sm:$0xff] %vm203, %v1025
  %1028 = vst.msk [vmem:[%s11] sm:$0xff] %vm203, %v1025
  %1030 = vrot.lane.b32.xlu0 %v1016, 96
  %v1031 = vpop.permute.xlu0 %1030
  %1033 = vst.msk [vmem:[%s12] sm:$0xff] %vm203, %v1031
  %v1034 = vld [vmem:[#allocation3] sm:$0xff]
  %v1035 = vld [vmem:[#allocation3 + $0x8] sm:$0xff]
  %v1036 = vld [vmem:[#allocation3 + $0x10] sm:$0xff]
  %v1037 = vld [vmem:[#allocation3 + $0x18] sm:$0xff]
  %v1038 = vld [vmem:[#allocation3 + $0x20] sm:$0xff]
  %v1039 = vld [vmem:[#allocation3 + $0x28] sm:$0xff]
  %v1040 = vld [vmem:[#allocation3 + $0x30] sm:$0xff]
  %v1041 = vld [vmem:[#allocation3 + $0x38] sm:$0xff]
  %v1042 = vld [vmem:[%s6] sm:$0xff]
  %v1043 = vld [vmem:[%s6 + $0x8] sm:$0xff]
  %v1044 = vld [vmem:[%s6 + $0x10] sm:$0xff]
  %v1045 = vld [vmem:[%s6 + $0x18] sm:$0xff]
  %v1046 = vld [vmem:[%s7] sm:$0x1]
  %v1048 = vlaneseq
  %v1049 = vshrl.u32 %v1048, 7
  %v1050 = vsub.s32 0, %v1049
  %v1051 = vrot.slane %v1046, %v1050
  %v1054 = vsel %vm203, %v1034, 0
  %v1057 = vsel %vm203, %v1035, 0
  %v1060 = vsel %vm203, %v1036, 0
  %v1063 = vsel %vm203, %v1037, 0
  %v1066 = vsel %vm203, %v1038, 0
  %v1069 = vsel %vm203, %v1039, 0
  %v1072 = vsel %vm203, %v1040, 0
  %v1075 = vsel %vm203, %v1041, 0
  %1077 = vmatprep.subr.mxu0 0.0
  %1078 = vmatpush1.msra.mxu0 %v1042
  %1079 = vmatprep.subr.mxu0 0.0
  %1080 = vmatpush1.msra.mxu0 %v1043
  %1081 = vmatprep.subr.mxu0 0.0
  %1082 = vmatpush1.msra.mxu0 %v1044
  %1083 = vmatprep.subr.mxu0 0.0
  %1084 = vmatpush1.msra.mxu0 %v1045
  %1085 = vmatprep.subr.mxu0 0.0
  %1086 = vmatpush1.msra.mxu0 0.0
  %1087 = vmatprep.subr.mxu0 0.0
  %1088 = vmatpush1.msra.mxu0 0.0
  %1089 = vmatprep.subr.mxu0 0.0
  %1090 = vmatpush1.msra.mxu0 0.0
  %1091 = vmatprep.subr.mxu0 0.0
  %1092 = vmatpush1.msra.mxu0 0.0
  %1093 = vmatprep.subr.mxu0 0.0
  %1094 = vmatpush1.msra.mxu0 0.0
  %1095 = vmatprep.subr.mxu0 0.0
  %1096 = vmatpush1.msra.mxu0 0.0
  %1097 = vmatprep.subr.mxu0 0.0
  %1098 = vmatpush1.msra.mxu0 0.0
  %1099 = vmatprep.subr.mxu0 0.0
  %1100 = vmatpush1.msra.mxu0 0.0
  %1101 = vmatprep.subr.mxu0 0.0
  %1102 = vmatpush1.msra.mxu0 0.0
  %1103 = vmatprep.subr.mxu0 0.0
  %1104 = vmatpush1.msra.mxu0 0.0
  %1105 = vmatprep.subr.mxu0 0.0
  %1106 = vmatpush1.msra.mxu0 0.0
  %1107 = vmatprep.subr.mxu0 0.0
  %1108 = vmatpush1.msra.mxu0 0.0
  %1109 = vmatprep.subr.mxu0 0.0
  %1110 = vmatpush1.msra.mxu0 0.0
  %1111 = vmatprep.subr.mxu0 0.0
  %1112 = vmatpush1.msra.mxu0 0.0
  %1113 = vmatprep.subr.mxu0 0.0
  %1114 = vmatpush1.msra.mxu0 0.0
  %1115 = vmatprep.subr.mxu0 0.0
  %1116 = vmatpush1.msra.mxu0 0.0
  %1117 = vmatprep.subr.mxu0 0.0
  %1118 = vmatpush1.msra.mxu0 0.0
  %1119 = vmatprep.subr.mxu0 0.0
  %1120 = vmatpush1.msra.mxu0 0.0
  %1121 = vmatprep.subr.mxu0 0.0
  %1122 = vmatpush1.msra.mxu0 0.0
  %1123 = vmatprep.subr.mxu0 0.0
  %1124 = vmatpush1.msra.mxu0 0.0
  %1125 = vmatprep.subr.mxu0 0.0
  %1126 = vmatpush1.msra.mxu0 0.0
  %1127 = vmatprep.subr.mxu0 0.0
  %1128 = vmatpush1.msra.mxu0 0.0
  %1129 = vmatprep.subr.mxu0 0.0
  %1130 = vmatpush1.msra.mxu0 0.0
  %1131 = vmatprep.subr.mxu0 0.0
  %1132 = vmatpush1.msra.mxu0 0.0
  %1133 = vmatprep.subr.mxu0 0.0
  %1134 = vmatpush1.msra.mxu0 0.0
  %1135 = vmatprep.subr.mxu0 0.0
  %1136 = vmatpush1.msra.mxu0 0.0
  %1137 = vmatprep.subr.mxu0 0.0
  %1138 = vmatpush1.msra.mxu0 0.0
  %1139 = vmatprep.subr.mxu0 0.0
  %1140 = vmatpush1.msra.mxu0 0.0
  %1141 = vmatprep.mubr.f32.mxu0 0.0
  %1142 = vmatmul.mubr.f32.gmra.mrb[0].mxu0 %v1054
  %v1143 = vpop.f32.mrb[0].mxu0
  %v1144 = vadd.f32 %v1051, %v1143
  %v1145 = vpop.f32.mrb[0].mxu0
  %1146 = vmatprep.mubr.f32.mxu0 0.0
  %1147 = vmatmul.mubr.f32.gmra.mrb[0].mxu0 %v1057
  %v1148 = vpop.f32.mrb[0].mxu0
  %v1149 = vadd.f32 %v1051, %v1148
  %v1150 = vpop.f32.mrb[0].mxu0
  %1151 = vmatprep.mubr.f32.mxu0 0.0
  %1152 = vmatmul.mubr.f32.gmra.mrb[0].mxu0 %v1060
  %v1153 = vpop.f32.mrb[0].mxu0
  %v1154 = vadd.f32 %v1051, %v1153
  %v1155 = vpop.f32.mrb[0].mxu0
  %1156 = vmatprep.mubr.f32.mxu0 0.0
  %1157 = vmatmul.mubr.f32.gmra.mrb[0].mxu0 %v1063
  %v1158 = vpop.f32.mrb[0].mxu0
  %v1159 = vadd.f32 %v1051, %v1158
  %v1160 = vpop.f32.mrb[0].mxu0
  %1161 = vmatprep.mubr.f32.mxu0 0.0
  %1162 = vmatmul.mubr.f32.gmra.mrb[0].mxu0 %v1066
  %v1163 = vpop.f32.mrb[0].mxu0
  %v1164 = vadd.f32 %v1051, %v1163
  %v1165 = vpop.f32.mrb[0].mxu0
  %1166 = vmatprep.mubr.f32.mxu0 0.0
  %1167 = vmatmul.mubr.f32.gmra.mrb[0].mxu0 %v1069
  %v1168 = vpop.f32.mrb[0].mxu0
  %v1169 = vadd.f32 %v1051, %v1168
  %v1170 = vpop.f32.mrb[0].mxu0
  %1171 = vmatprep.mubr.f32.mxu0 0.0
  %1172 = vmatmul.mubr.f32.gmra.mrb[0].mxu0 %v1072
  %v1173 = vpop.f32.mrb[0].mxu0
  %v1174 = vadd.f32 %v1051, %v1173
  %v1175 = vpop.f32.mrb[0].mxu0
  %1176 = vmatprep.mubr.f32.mxu0 0.0
  %1177 = vmatmul.mubr.f32.gmra.mrb[0].mxu0 %v1075
  %v1178 = vpop.f32.mrb[0].mxu0
  %v1179 = vadd.f32 %v1051, %v1178
  %v1180 = vpop.f32.mrb[0].mxu0
  %1181 = vdwg.mxu0
  %v1182 = vmax.f32 %v1144, 0.0
  %v1183 = vmax.f32 %v1149, 0.0
  %v1184 = vmax.f32 %v1154, 0.0
  %v1185 = vmax.f32 %v1159, 0.0
  %v1186 = vmax.f32 %v1164, 0.0
  %v1187 = vmax.f32 %v1169, 0.0
  %v1188 = vmax.f32 %v1174, 0.0
  %v1189 = vmax.f32 %v1179, 0.0
  %v1190 = vld [vmem:[%s8] sm:$0xff]
  %v1191 = vld [vmem:[%s8 + $0x8] sm:$0xff]
  %v1192 = vld [vmem:[%s8 + $0x10] sm:$0xff]
  %v1193 = vld [vmem:[%s8 + $0x18] sm:$0xff]
  %v1194 = vld [vmem:[%s9] sm:$0x1]
  %v1196 = vlaneseq
  %v1197 = vshrl.u32 %v1196, 7
  %v1198 = vsub.s32 0, %v1197
  %v1199 = vrot.slane %v1194, %v1198
  %v1202 = vsel %vm203, %v1182, 0
  %v1205 = vsel %vm203, %v1183, 0
  %v1208 = vsel %vm203, %v1184, 0
  %v1211 = vsel %vm203, %v1185, 0
  %v1214 = vsel %vm203, %v1186, 0
  %v1217 = vsel %vm203, %v1187, 0
  %v1220 = vsel %vm203, %v1188, 0
  %v1223 = vsel %vm203, %v1189, 0
  %1225 = vmatprep.subr.mxu0 0.0
  %1226 = vmatpush1.msra.mxu0 %v1190
  %1227 = vmatprep.subr.mxu0 0.0
  %1228 = vmatpush1.msra.mxu0 %v1191
  %1229 = vmatprep.subr.mxu0 0.0
  %1230 = vmatpush1.msra.mxu0 %v1192
  %1231 = vmatprep.subr.mxu0 0.0
  %1232 = vmatpush1.msra.mxu0 %v1193
  %1233 = vmatprep.subr.mxu0 0.0
  %1234 = vmatpush1.msra.mxu0 0.0
  %1235 = vmatprep.subr.mxu0 0.0
  %1236 = vmatpush1.msra.mxu0 0.0
  %1237 = vmatprep.subr.mxu0 0.0
  %1238 = vmatpush1.msra.mxu0 0.0
  %1239 = vmatprep.subr.mxu0 0.0
  %1240 = vmatpush1.msra.mxu0 0.0
  %1241 = vmatprep.subr.mxu0 0.0
  %1242 = vmatpush1.msra.mxu0 0.0
  %1243 = vmatprep.subr.mxu0 0.0
  %1244 = vmatpush1.msra.mxu0 0.0
  %1245 = vmatprep.subr.mxu0 0.0
  %1246 = vmatpush1.msra.mxu0 0.0
  %1247 = vmatprep.subr.mxu0 0.0
  %1248 = vmatpush1.msra.mxu0 0.0
  %1249 = vmatprep.subr.mxu0 0.0
  %1250 = vmatpush1.msra.mxu0 0.0
  %1251 = vmatprep.subr.mxu0 0.0
  %1252 = vmatpush1.msra.mxu0 0.0
  %1253 = vmatprep.subr.mxu0 0.0
  %1254 = vmatpush1.msra.mxu0 0.0
  %1255 = vmatprep.subr.mxu0 0.0
  %1256 = vmatpush1.msra.mxu0 0.0
  %1257 = vmatprep.subr.mxu0 0.0
  %1258 = vmatpush1.msra.mxu0 0.0
  %1259 = vmatprep.subr.mxu0 0.0
  %1260 = vmatpush1.msra.mxu0 0.0
  %1261 = vmatprep.subr.mxu0 0.0
  %1262 = vmatpush1.msra.mxu0 0.0
  %1263 = vmatprep.subr.mxu0 0.0
  %1264 = vmatpush1.msra.mxu0 0.0
  %1265 = vmatprep.subr.mxu0 0.0
  %1266 = vmatpush1.msra.mxu0 0.0
  %1267 = vmatprep.subr.mxu0 0.0
  %1268 = vmatpush1.msra.mxu0 0.0
  %1269 = vmatprep.subr.mxu0 0.0
  %1270 = vmatpush1.msra.mxu0 0.0
  %1271 = vmatprep.subr.mxu0 0.0
  %1272 = vmatpush1.msra.mxu0 0.0
  %1273 = vmatprep.subr.mxu0 0.0
  %1274 = vmatpush1.msra.mxu0 0.0
  %1275 = vmatprep.subr.mxu0 0.0
  %1276 = vmatpush1.msra.mxu0 0.0
  %1277 = vmatprep.subr.mxu0 0.0
  %1278 = vmatpush1.msra.mxu0 0.0
  %1279 = vmatprep.subr.mxu0 0.0
  %1280 = vmatpush1.msra.mxu0 0.0
  %1281 = vmatprep.subr.mxu0 0.0
  %1282 = vmatpush1.msra.mxu0 0.0
  %1283 = vmatprep.subr.mxu0 0.0
  %1284 = vmatpush1.msra.mxu0 0.0
  %1285 = vmatprep.subr.mxu0 0.0
  %1286 = vmatpush1.msra.mxu0 0.0
  %1287 = vmatprep.subr.mxu0 0.0
  %1288 = vmatpush1.msra.mxu0 0.0
  %1289 = vmatprep.mubr.f32.mxu0 0.0
  %1290 = vmatmul.mubr.f32.gmra.mrb[0].mxu0 %v1202
  %v1291 = vpop.f32.mrb[0].mxu0
  %v1292 = vadd.f32 %v1199, %v1291
  %v1293 = vpop.f32.mrb[0].mxu0
  %1294 = vmatprep.mubr.f32.mxu0 0.0
  %1295 = vmatmul.mubr.f32.gmra.mrb[0].mxu0 %v1205
  %v1296 = vpop.f32.mrb[0].mxu0
  %v1297 = vadd.f32 %v1199, %v1296
  %v1298 = vpop.f32.mrb[0].mxu0
  %1299 = vmatprep.mubr.f32.mxu0 0.0
  %1300 = vmatmul.mubr.f32.gmra.mrb[0].mxu0 %v1208
  %v1301 = vpop.f32.mrb[0].mxu0
  %v1302 = vadd.f32 %v1199, %v1301
  %v1303 = vpop.f32.mrb[0].mxu0
  %1304 = vmatprep.mubr.f32.mxu0 0.0
  %1305 = vmatmul.mubr.f32.gmra.mrb[0].mxu0 %v1211
  %v1306 = vpop.f32.mrb[0].mxu0
  %v1307 = vadd.f32 %v1199, %v1306
  %v1308 = vpop.f32.mrb[0].mxu0
  %1309 = vmatprep.mubr.f32.mxu0 0.0
  %1310 = vmatmul.mubr.f32.gmra.mrb[0].mxu0 %v1214
  %v1311 = vpop.f32.mrb[0].mxu0
  %v1312 = vadd.f32 %v1199, %v1311
  %v1313 = vpop.f32.mrb[0].mxu0
  %1314 = vmatprep.mubr.f32.mxu0 0.0
  %1315 = vmatmul.mubr.f32.gmra.mrb[0].mxu0 %v1217
  %v1316 = vpop.f32.mrb[0].mxu0
  %v1317 = vadd.f32 %v1199, %v1316
  %v1318 = vpop.f32.mrb[0].mxu0
  %1319 = vmatprep.mubr.f32.mxu0 0.0
  %1320 = vmatmul.mubr.f32.gmra.mrb[0].mxu0 %v1220
  %v1321 = vpop.f32.mrb[0].mxu0
  %v1322 = vadd.f32 %v1199, %v1321
  %v1323 = vpop.f32.mrb[0].mxu0
  %1324 = vmatprep.mubr.f32.mxu0 0.0
  %1325 = vmatmul.mubr.f32.gmra.mrb[0].mxu0 %v1223
  %v1326 = vpop.f32.mrb[0].mxu0
  %v1327 = vadd.f32 %v1199, %v1326
  %v1328 = vpop.f32.mrb[0].mxu0
  %1329 = vdwg.mxu0
  %1330 = vst [vmem:[%s10] sm:$0xff] %v1292
  %1331 = vst [vmem:[%s10 + $0x8] sm:$0xff] %v1297
  %1332 = vst [vmem:[%s10 + $0x10] sm:$0xff] %v1302
  %1333 = vst [vmem:[%s10 + $0x18] sm:$0xff] %v1307
  %1334 = vst [vmem:[%s10 + $0x20] sm:$0xff] %v1312
  %1335 = vst [vmem:[%s10 + $0x28] sm:$0xff] %v1317
  %1336 = vst [vmem:[%s10 + $0x30] sm:$0xff] %v1322
  %1337 = vst [vmem:[%s10 + $0x38] sm:$0xff] %v1327
  // Predicated region
  $region42: #{policy_forward.1} parent=0 // pred_check
    _
  $region43: #{policy_forward.1} parent=0 // pred_check_branch
    %1339 = sbr.rel (0) target = $region45
  $region44: #{policy_forward.1} parent=0 // pred_region
    _
  $region45: #{policy_forward.1} parent=0 // pred_fallthru
    _
  // Predicated region
  $region46: #{policy_forward.1} parent=0 // pred_check
    _
  $region47: #{policy_forward.1} parent=0 // pred_check_branch
    %1341 = sbr.rel (0) target = $region49
  $region48: #{policy_forward.1} parent=0 // pred_region
    _
  $region49: #{policy_forward.1} parent=0 // pred_fallthru
    _
  // Predicated region
  $region50: #{policy_forward.1} parent=0 // pred_check
    _
  $region51: #{policy_forward.1} parent=0 // pred_check_branch
    %1343 = sbr.rel (0) target = $region53
  $region52: #{policy_forward.1} parent=0 // pred_region
    _
  $region53: #{policy_forward.1} parent=0 // pred_fallthru
    _
  // Predicated region
  $region54: #{policy_forward.1} parent=0 // pred_check
    _
  $region55: #{policy_forward.1} parent=0 // pred_check_branch
    %1345 = sbr.rel (0) target = $region57
  $region56: #{policy_forward.1} parent=0 // pred_region
    _
  $region57: #{policy_forward.1} parent=0 // pred_fallthru
    _
  // Predicated region
  $region58: #{policy_forward.1} parent=0 // pred_check
    _
  $region59: #{policy_forward.1} parent=0 // pred_check_branch
    %1347 = sbr.rel (0) target = $region61
  $region60: #{policy_forward.1} parent=0 // pred_region
    _
  $region61: #{policy_forward.1} parent=0 // pred_fallthru
    _
  // Predicated region
  $region62: #{policy_forward.1} parent=0 // pred_check
    _
  $region63: #{policy_forward.1} parent=0 // pred_check_branch
    %1349 = sbr.rel (0) target = $region65
  $region64: #{policy_forward.1} parent=0 // pred_region
    _
  $region65: #{policy_forward.1} parent=0 // pred_fallthru
    _

</llo_original>
